<compile_context>
chip_gen: v5e
topology: v5e:2x2
jax: 0.10.0
libtpu: 0.0.40
codegen_flags: <defaults>
</compile_context>

<pallas_src>
import functools

import jax
import jax.numpy as jnp
from jax.experimental import pallas as pl
from jax.experimental.pallas import tpu as pltpu

BN_EPS = 1e-5
_PADL = 8          # left-halo storage offset (multiple of 8 -> aligned stores)


# ----------------------------------------------------------------------------
# Host-side parameter preparation
# ----------------------------------------------------------------------------
def _fold_params(params):
    """Fold eval-mode BatchNorm (running stats) into conv weights + a bias."""
    def fold(w, bn, bshape):
        gamma, beta, mean, var = bn
        scale = gamma / jnp.sqrt(var + BN_EPS)
        bias = beta - mean * scale
        return w * scale.reshape(bshape), bias

    w1, b1 = fold(params["w1"], params["bn1"], (1, -1))
    w2, b2 = fold(params["w2"], params["bn2"], (1, 1, 1, -1))
    w3, b3 = fold(params["w3"], params["bn3"], (1, -1))
    return w1, b1, w2, b2, w3, b3


def _choose_frames_per_block(F, H, W, Cin, planes, Cout, budget_bytes=12 << 20):
    """Largest frame block fitting a conservative VMEM budget, grid >= 2."""
    hw = H * W
    per_frame = (hw * Cin * 4 * 3                                  # x blocks + live copy
                 + hw * Cout * 4 * 3                               # out blocks + y3
                 + (H + 2) * (W + _PADL + 1) * planes * 4 * 2      # pad scratch + value
                 + hw * planes * 4 * 4)                            # y1 / acc / y2 / tap
    cap = max(1, budget_bytes // per_frame)
    cap = min(cap, F if F < 2 else F // 2)     # keep >= 2 grid steps (v7x megacore)
    for fb in range(cap, 0, -1):
        if F % fb == 0 and (fb * hw) % 8 == 0:  # block rows must stay 8-aligned
            return fb
    return F                                    # single block == full dim (always legal)


# ----------------------------------------------------------------------------
# Fused bottleneck kernel: 1x1 -> 3x3 -> 1x1 + residual, BN folded, ReLU
# ----------------------------------------------------------------------------
def _bottleneck_kernel(x_ref, w1_ref, b1_ref, w2_ref, b2_ref, w3_ref, b3_ref,
                       o_ref, pad_ref, *, Fb, H, W, planes):
    bf16 = jnp.bfloat16
    Mb = Fb * H * W
    x = x_ref[...]                                       # (Mb, Cin) f32; also residual

    # ---- conv1 (1x1x1) + BN1 (scale folded into w1) + ReLU : one MXU matmul
    y1 = jnp.dot(x.astype(bf16), w1_ref[...], preferred_element_type=jnp.float32)
    y1 = jnp.maximum(y1 + b1_ref[...], 0.0)              # (Mb, planes) f32

    # ---- conv2 (1x3x3, padding (0,1,1)) + BN2 + ReLU
    # Zero-haloed VMEM scratch replaces the old HBM jnp.pad pass.  Interior is
    # written at a tile-aligned sublane offset so the store is unmasked.
    pad_ref[...] = jnp.zeros_like(pad_ref)
    pad_ref[:, 1:H + 1, _PADL:_PADL + W, :] = y1.reshape(Fb, H, W, planes)
    xp = pad_ref[...]                                    # (Fb, H+2, W+_PADL+1, planes)

    acc = jnp.zeros((Mb, planes), jnp.float32)
    for t in range(9):                                   # 9 shifted taps, f32 accumulate
        dy, dx = t // 3, t % 3
        tap = xp[:, dy:dy + H, _PADL - 1 + dx:_PADL - 1 + dx + W, :]
        tap = tap.reshape(Mb, planes).astype(bf16)
        acc = acc + jnp.dot(tap, w2_ref[t], preferred_element_type=jnp.float32)
    # TODO(synk): pack the 9 taps into a single K=9*planes im2col matmul once
    # unaligned lane-dim concatenation (planes < 128 pieces) is guaranteed to lower.
    y2 = jnp.maximum(acc + b2_ref[...], 0.0)             # (Mb, planes) f32

    # ---- conv3 (1x1x1) + BN3 + residual + ReLU
    y3 = jnp.dot(y2.astype(bf16), w3_ref[...], preferred_element_type=jnp.float32)
    y3 = y3 + b3_ref[...] + x
    o_ref[...] = jnp.maximum(y3, 0.0).astype(o_ref.dtype)


def bottleneck_forward(x_ncdhw, params):
    """Fused Bottleneck forward (stride=1, downsample=None, eval-mode BN)."""
    N, Cin, T, H, W = x_ncdhw.shape
    w1, b1, w2, b2, w3, b3 = _fold_params(params)
    planes = w1.shape[1]
    Cout = w3.shape[1]
    assert Cout == Cin, "residual path requires inplanes == 4 * planes"
    # TODO(synk): stride != 1 and a user-provided `downsample` module are not
    # implemented (module defaults: stride=1, downsample=None).

    F = N * T
    M = F * H * W
    Fb = _choose_frames_per_block(F, H, W, Cin, planes, Cout)
    Mb = Fb * H * W

    # NCDHW -> channels-last frames, flattened to a lane-dense (M, Cin) slab.
    x_flat = jnp.transpose(x_ncdhw, (0, 2, 3, 4, 1)).reshape(M, Cin)

    bf16 = jnp.bfloat16
    w1b = w1.astype(bf16)                                # (Cin, planes)
    w2b = w2.reshape(9, planes, planes).astype(bf16)     # (9, planes, planes), dy-major
    w3b = w3.astype(bf16)                                # (planes, Cout)
    b1r = b1.reshape(1, -1).astype(jnp.float32)
    b2r = b2.reshape(1, -1).astype(jnp.float32)
    b3r = b3.reshape(1, -1).astype(jnp.float32)

    kern = functools.partial(_bottleneck_kernel, Fb=Fb, H=H, W=W, planes=planes)

    out_flat = pl.pallas_call(
        kern,
        out_shape=jax.ShapeDtypeStruct((M, Cout), jnp.float32),
        grid_spec=pltpu.PrefetchScalarGridSpec(
            num_scalar_prefetch=0,
            grid=(M // Mb,),
            in_specs=[
                pl.BlockSpec((Mb, Cin), lambda i: (i, 0)),                # x / residual
                pl.BlockSpec((Cin, planes), lambda i: (0, 0)),            # w1 (resident)
                pl.BlockSpec((1, planes), lambda i: (0, 0)),              # b1
                pl.BlockSpec((9, planes, planes), lambda i: (0, 0, 0)),   # w2 (resident)
                pl.BlockSpec((1, planes), lambda i: (0, 0)),              # b2
                pl.BlockSpec((planes, Cout), lambda i: (0, 0)),           # w3 (resident)
                pl.BlockSpec((1, Cout), lambda i: (0, 0)),                # b3
            ],
            out_specs=pl.BlockSpec((Mb, Cout), lambda i: (i, 0)),
            scratch_shapes=[
                pltpu.VMEM((Fb, H + 2, W + _PADL + 1, planes), jnp.float32),
            ],
        ),
        compiler_params=pltpu.CompilerParams(
            dimension_semantics=("parallel",),
            vmem_limit_bytes=32 << 20,
        ),
    )(x_flat, w1b, b1r, w2b, b2r, w3b, b3r)

    out = out_flat.reshape(N, T, H, W, Cout)
    return jnp.transpose(out, (0, 4, 1, 2, 3))            # back to NCDHW


# ----------------------------------------------------------------------------
# Pure-JAX reference (lax convs, same folded weights and bf16 operand casts)
# ----------------------------------------------------------------------------
def ref_forward(x_ncdhw, params):
    N, Cin, T, H, W = x_ncdhw.shape
    w1, b1, w2, b2, w3, b3 = _fold_params(params)
    bf16 = jnp.bfloat16
    x = jnp.transpose(x_ncdhw, (0, 2, 3, 4, 1)).reshape(N * T, H, W, Cin)
    dn = ("NHWC", "HWIO", "NHWC")
    conv = functools.partial(jax.lax.conv_general_dilated, window_strides=(1, 1),
                             dimension_numbers=dn,
                             preferred_element_type=jnp.float32)
    o = conv(x.astype(bf16), w1.astype(bf16)[None, None], padding="VALID")
    o = jax.nn.relu(o + b1)
    o = conv(o.astype(bf16), w2.astype(bf16), padding="SAME")
    o = jax.nn.relu(o + b2)
    o = conv(o.astype(bf16), w3.astype(bf16)[None, None], padding="VALID")
    o = jax.nn.relu(o + b3 + x)
    o = o.reshape(N, T, H, W, -1)
    return jnp.transpose(o, (0, 4, 1, 2, 3))


if __name__ == "__main__":
    key = jax.random.PRNGKey(0)
    N, T, H, W = 2, 2, 8, 8
    planes = 16
    inplanes = planes * 4            # residual add requires inplanes == 4*planes

    ks = jax.random.split(key, 8)
    x = jax.random.normal(ks[0], (N, inplanes, T, H, W), jnp.float32)

    def bn_params(k, c):
        k1, k2, k3, k4 = jax.random.split(k, 4)
        return (jax.random.uniform(k1, (c,), jnp.float32, 0.5, 1.5),
                jax.random.normal(k2, (c,), jnp.float32) * 0.1,
                jax.random.normal(k3, (c,), jnp.float32) * 0.1,
                jax.random.uniform(k4, (c,), jnp.float32, 0.5, 1.5))

    params = {
        # conv weights stored channels-last: (Cin, Cout) / (kh, kw, Cin, Cout)
        "w1": jax.random.normal(ks[1], (inplanes, planes), jnp.float32) * 0.1,
        "w2": jax.random.normal(ks[2], (3, 3, planes, planes), jnp.float32) * 0.1,
        "w3": jax.random.normal(ks[3], (planes, 4 * planes), jnp.float32) * 0.1,
        "bn1": bn_params(ks[4], planes),
        "bn2": bn_params(ks[5], planes),
        "bn3": bn_params(ks[6], 4 * planes),
    }

    fwd = jax.jit(bottleneck_forward)
    out = jax.block_until_ready(fwd(x, params))
    ref = jax.block_until_ready(ref_forward(x, params))

    assert out.shape == (N, 4 * planes, T, H, W)
    max_err = float(jnp.max(jnp.abs(out - ref)))
    assert jnp.allclose(out, ref, atol=5e-3, rtol=5e-3), max_err
    print("KERNEL_OK")
</pallas_src>

<mosaic_0001>
module attributes {stable_mosaic.version = 11 : i64} {
  func.func @_bottleneck_kernel(%arg0: i32, %arg1: memref<128x64xf32, #tpu.memory_space<vmem>>, %arg2: memref<64x16xbf16, #tpu.memory_space<vmem>>, %arg3: memref<1x16xf32, #tpu.memory_space<vmem>>, %arg4: memref<9x16x16xbf16, #tpu.memory_space<vmem>>, %arg5: memref<1x16xf32, #tpu.memory_space<vmem>>, %arg6: memref<16x64xbf16, #tpu.memory_space<vmem>>, %arg7: memref<1x64xf32, #tpu.memory_space<vmem>>, %arg8: memref<128x64xf32, #tpu.memory_space<vmem>>, %arg9: memref<2x10x17x16xf32, #tpu.memory_space<vmem>>) attributes {dimension_semantics = [#tpu.dimension_semantics<parallel>], iteration_bounds = array<i64: 2>, scalar_prefetch = 0 : i64, scratch_operands = 1 : i64, tpu.core_type = #tpu.core_type<tc>, window_params = [{transform_indices = @transform_0, window_bounds = array<i64: 128, 64>}, {pipeline_mode = #tpu.pipeline_mode<synchronous>, transform_indices = @transform_1, window_bounds = array<i64: 64, 16>}, {pipeline_mode = #tpu.pipeline_mode<synchronous>, transform_indices = @transform_2, window_bounds = array<i64: 1, 16>}, {pipeline_mode = #tpu.pipeline_mode<synchronous>, transform_indices = @transform_3, window_bounds = array<i64: 9, 16, 16>}, {pipeline_mode = #tpu.pipeline_mode<synchronous>, transform_indices = @transform_4, window_bounds = array<i64: 1, 16>}, {pipeline_mode = #tpu.pipeline_mode<synchronous>, transform_indices = @transform_5, window_bounds = array<i64: 16, 64>}, {pipeline_mode = #tpu.pipeline_mode<synchronous>, transform_indices = @transform_6, window_bounds = array<i64: 1, 64>}, {transform_indices = @transform_7, window_bounds = array<i64: 128, 64>}]} {
    %c0 = arith.constant 0 : index
    %c0_0 = arith.constant 0 : index
    %0 = vector.load %arg1[%c0, %c0_0] : memref<128x64xf32, #tpu.memory_space<vmem>>, vector<128x64xf32>
    %1 = arith.truncf %0 : vector<128x64xf32> to vector<128x64xbf16>
    %c0_1 = arith.constant 0 : index
    %c0_2 = arith.constant 0 : index
    %2 = vector.load %arg2[%c0_1, %c0_2] : memref<64x16xbf16, #tpu.memory_space<vmem>>, vector<64x16xbf16>
    %cst = arith.constant dense<0.000000e+00> : vector<128x16xf32>
    %3 = tpu.matmul %1, %2, %cst {dimension_numbers = #tpu.dot_dimension_numbers<[1], [0], [0], [1], [0, 0, 1, 1], [], []>} : vector<128x64xbf16>, vector<64x16xbf16>, vector<128x16xf32> -> vector<128x16xf32>
    %c0_3 = arith.constant 0 : index
    %c0_4 = arith.constant 0 : index
    %4 = vector.load %arg3[%c0_3, %c0_4] : memref<1x16xf32, #tpu.memory_space<vmem>>, vector<1x16xf32>
    %5 = vector.broadcast %4 : vector<1x16xf32> to vector<128x16xf32>
    %6 = arith.addf %3, %5 : vector<128x16xf32>
    %cst_5 = arith.constant 0.000000e+00 : f32
    %7 = vector.broadcast %cst_5 : f32 to vector<128x16xf32>
    %8 = arith.maximumf %6, %7 : vector<128x16xf32>
    %cst_6 = arith.constant 0.000000e+00 : f32
    %9 = vector.broadcast %cst_6 : f32 to vector<2x10x17x16xf32>
    %c0_7 = arith.constant 0 : index
    %c0_8 = arith.constant 0 : index
    %c0_9 = arith.constant 0 : index
    %c0_10 = arith.constant 0 : index
    %10 = vector.load %arg9[%c0_7, %c0_8, %c0_9, %c0_10] : memref<2x10x17x16xf32, #tpu.memory_space<vmem>>, vector<2x10x17x16xf32>
    tpu.vector_store %arg9[%c0_7, %c0_8, %c0_9, %c0_10], %9 {strides = array<i32>} : memref<2x10x17x16xf32, #tpu.memory_space<vmem>>, vector<2x10x17x16xf32>,
    %11 = vector.shape_cast %8 : vector<128x16xf32> to vector<2x8x8x16xf32>
    %c0_11 = arith.constant 0 : index
    %c1 = arith.constant 1 : index
    %c8 = arith.constant 8 : index
    %c0_12 = arith.constant 0 : index
    %12 = vector.load %arg9[%c0_11, %c1, %c8, %c0_12] : memref<2x10x17x16xf32, #tpu.memory_space<vmem>>, vector<2x8x8x16xf32>
    tpu.vector_store %arg9[%c0_11, %c1, %c8, %c0_12], %11 {strides = array<i32>} : memref<2x10x17x16xf32, #tpu.memory_space<vmem>>, vector<2x8x8x16xf32>,
    %c0_13 = arith.constant 0 : index
    %c0_14 = arith.constant 0 : index
    %c0_15 = arith.constant 0 : index
    %c0_16 = arith.constant 0 : index
    %13 = vector.load %arg9[%c0_13, %c0_14, %c0_15, %c0_16] : memref<2x10x17x16xf32, #tpu.memory_space<vmem>>, vector<2x10x17x16xf32>
    %cst_17 = arith.constant 0.000000e+00 : f32
    %14 = vector.broadcast %cst_17 : f32 to vector<128x16xf32>
    %15 = vector.extract_strided_slice %13 {offsets = [0, 0, 7, 0], sizes = [2, 8, 8, 16], strides = [1, 1, 1, 1]} : vector<2x10x17x16xf32> to vector<2x8x8x16xf32>
    %16 = vector.shape_cast %15 : vector<2x8x8x16xf32> to vector<128x16xf32>
    %17 = arith.truncf %16 : vector<128x16xf32> to vector<128x16xbf16>
    %c0_18 = arith.constant 0 : index
    %c0_19 = arith.constant 0 : index
    %c0_20 = arith.constant 0 : index
    %18 = vector.load %arg4[%c0_18, %c0_19, %c0_20] : memref<9x16x16xbf16, #tpu.memory_space<vmem>>, vector<1x16x16xbf16>
    %19 = vector.shape_cast %18 : vector<1x16x16xbf16> to vector<16x16xbf16>
    %cst_21 = arith.constant dense<0.000000e+00> : vector<128x16xf32>
    %20 = tpu.matmul %17, %19, %cst_21 {dimension_numbers = #tpu.dot_dimension_numbers<[1], [0], [0], [1], [0, 0, 1, 1], [], []>} : vector<128x16xbf16>, vector<16x16xbf16>, vector<128x16xf32> -> vector<128x16xf32>
    %21 = arith.addf %14, %20 : vector<128x16xf32>
    %22 = vector.extract_strided_slice %13 {offsets = [0, 0, 8, 0], sizes = [2, 8, 8, 16], strides = [1, 1, 1, 1]} : vector<2x10x17x16xf32> to vector<2x8x8x16xf32>
    %23 = vector.shape_cast %22 : vector<2x8x8x16xf32> to vector<128x16xf32>
    %24 = arith.truncf %23 : vector<128x16xf32> to vector<128x16xbf16>
    %c1_22 = arith.constant 1 : index
    %c0_23 = arith.constant 0 : index
    %c0_24 = arith.constant 0 : index
    %25 = vector.load %arg4[%c1_22, %c0_23, %c0_24] : memref<9x16x16xbf16, #tpu.memory_space<vmem>>, vector<1x16x16xbf16>
    %26 = vector.shape_cast %25 : vector<1x16x16xbf16> to vector<16x16xbf16>
    %cst_25 = arith.constant dense<0.000000e+00> : vector<128x16xf32>
    %27 = tpu.matmul %24, %26, %cst_25 {dimension_numbers = #tpu.dot_dimension_numbers<[1], [0], [0], [1], [0, 0, 1, 1], [], []>} : vector<128x16xbf16>, vector<16x16xbf16>, vector<128x16xf32> -> vector<128x16xf32>
    %28 = arith.addf %21, %27 : vector<128x16xf32>
    %29 = vector.extract_strided_slice %13 {offsets = [0, 0, 9, 0], sizes = [2, 8, 8, 16], strides = [1, 1, 1, 1]} : vector<2x10x17x16xf32> to vector<2x8x8x16xf32>
    %30 = vector.shape_cast %29 : vector<2x8x8x16xf32> to vector<128x16xf32>
    %31 = arith.truncf %30 : vector<128x16xf32> to vector<128x16xbf16>
    %c2 = arith.constant 2 : index
    %c0_26 = arith.constant 0 : index
    %c0_27 = arith.constant 0 : index
    %32 = vector.load %arg4[%c2, %c0_26, %c0_27] : memref<9x16x16xbf16, #tpu.memory_space<vmem>>, vector<1x16x16xbf16>
    %33 = vector.shape_cast %32 : vector<1x16x16xbf16> to vector<16x16xbf16>
    %cst_28 = arith.constant dense<0.000000e+00> : vector<128x16xf32>
    %34 = tpu.matmul %31, %33, %cst_28 {dimension_numbers = #tpu.dot_dimension_numbers<[1], [0], [0], [1], [0, 0, 1, 1], [], []>} : vector<128x16xbf16>, vector<16x16xbf16>, vector<128x16xf32> -> vector<128x16xf32>
    %35 = arith.addf %28, %34 : vector<128x16xf32>
    %36 = vector.extract_strided_slice %13 {offsets = [0, 1, 7, 0], sizes = [2, 8, 8, 16], strides = [1, 1, 1, 1]} : vector<2x10x17x16xf32> to vector<2x8x8x16xf32>
    %37 = vector.shape_cast %36 : vector<2x8x8x16xf32> to vector<128x16xf32>
    %38 = arith.truncf %37 : vector<128x16xf32> to vector<128x16xbf16>
    %c3 = arith.constant 3 : index
    %c0_29 = arith.constant 0 : index
    %c0_30 = arith.constant 0 : index
    %39 = vector.load %arg4[%c3, %c0_29, %c0_30] : memref<9x16x16xbf16, #tpu.memory_space<vmem>>, vector<1x16x16xbf16>
    %40 = vector.shape_cast %39 : vector<1x16x16xbf16> to vector<16x16xbf16>
    %cst_31 = arith.constant dense<0.000000e+00> : vector<128x16xf32>
    %41 = tpu.matmul %38, %40, %cst_31 {dimension_numbers = #tpu.dot_dimension_numbers<[1], [0], [0], [1], [0, 0, 1, 1], [], []>} : vector<128x16xbf16>, vector<16x16xbf16>, vector<128x16xf32> -> vector<128x16xf32>
    %42 = arith.addf %35, %41 : vector<128x16xf32>
    %43 = vector.extract_strided_slice %13 {offsets = [0, 1, 8, 0], sizes = [2, 8, 8, 16], strides = [1, 1, 1, 1]} : vector<2x10x17x16xf32> to vector<2x8x8x16xf32>
    %44 = vector.shape_cast %43 : vector<2x8x8x16xf32> to vector<128x16xf32>
    %45 = arith.truncf %44 : vector<128x16xf32> to vector<128x16xbf16>
    %c4 = arith.constant 4 : index
    %c0_32 = arith.constant 0 : index
    %c0_33 = arith.constant 0 : index
    %46 = vector.load %arg4[%c4, %c0_32, %c0_33] : memref<9x16x16xbf16, #tpu.memory_space<vmem>>, vector<1x16x16xbf16>
    %47 = vector.shape_cast %46 : vector<1x16x16xbf16> to vector<16x16xbf16>
    %cst_34 = arith.constant dense<0.000000e+00> : vector<128x16xf32>
    %48 = tpu.matmul %45, %47, %cst_34 {dimension_numbers = #tpu.dot_dimension_numbers<[1], [0], [0], [1], [0, 0, 1, 1], [], []>} : vector<128x16xbf16>, vector<16x16xbf16>, vector<128x16xf32> -> vector<128x16xf32>
    %49 = arith.addf %42, %48 : vector<128x16xf32>
    %50 = vector.extract_strided_slice %13 {offsets = [0, 1, 9, 0], sizes = [2, 8, 8, 16], strides = [1, 1, 1, 1]} : vector<2x10x17x16xf32> to vector<2x8x8x16xf32>
    %51 = vector.shape_cast %50 : vector<2x8x8x16xf32> to vector<128x16xf32>
    %52 = arith.truncf %51 : vector<128x16xf32> to vector<128x16xbf16>
    %c5 = arith.constant 5 : index
    %c0_35 = arith.constant 0 : index
    %c0_36 = arith.constant 0 : index
    %53 = vector.load %arg4[%c5, %c0_35, %c0_36] : memref<9x16x16xbf16, #tpu.memory_space<vmem>>, vector<1x16x16xbf16>
    %54 = vector.shape_cast %53 : vector<1x16x16xbf16> to vector<16x16xbf16>
    %cst_37 = arith.constant dense<0.000000e+00> : vector<128x16xf32>
    %55 = tpu.matmul %52, %54, %cst_37 {dimension_numbers = #tpu.dot_dimension_numbers<[1], [0], [0], [1], [0, 0, 1, 1], [], []>} : vector<128x16xbf16>, vector<16x16xbf16>, vector<128x16xf32> -> vector<128x16xf32>
    %56 = arith.addf %49, %55 : vector<128x16xf32>
    %57 = vector.extract_strided_slice %13 {offsets = [0, 2, 7, 0], sizes = [2, 8, 8, 16], strides = [1, 1, 1, 1]} : vector<2x10x17x16xf32> to vector<2x8x8x16xf32>
    %58 = vector.shape_cast %57 : vector<2x8x8x16xf32> to vector<128x16xf32>
    %59 = arith.truncf %58 : vector<128x16xf32> to vector<128x16xbf16>
    %c6 = arith.constant 6 : index
    %c0_38 = arith.constant 0 : index
    %c0_39 = arith.constant 0 : index
    %60 = vector.load %arg4[%c6, %c0_38, %c0_39] : memref<9x16x16xbf16, #tpu.memory_space<vmem>>, vector<1x16x16xbf16>
    %61 = vector.shape_cast %60 : vector<1x16x16xbf16> to vector<16x16xbf16>
    %cst_40 = arith.constant dense<0.000000e+00> : vector<128x16xf32>
    %62 = tpu.matmul %59, %61, %cst_40 {dimension_numbers = #tpu.dot_dimension_numbers<[1], [0], [0], [1], [0, 0, 1, 1], [], []>} : vector<128x16xbf16>, vector<16x16xbf16>, vector<128x16xf32> -> vector<128x16xf32>
    %63 = arith.addf %56, %62 : vector<128x16xf32>
    %64 = vector.extract_strided_slice %13 {offsets = [0, 2, 8, 0], sizes = [2, 8, 8, 16], strides = [1, 1, 1, 1]} : vector<2x10x17x16xf32> to vector<2x8x8x16xf32>
    %65 = vector.shape_cast %64 : vector<2x8x8x16xf32> to vector<128x16xf32>
    %66 = arith.truncf %65 : vector<128x16xf32> to vector<128x16xbf16>
    %c7 = arith.constant 7 : index
    %c0_41 = arith.constant 0 : index
    %c0_42 = arith.constant 0 : index
    %67 = vector.load %arg4[%c7, %c0_41, %c0_42] : memref<9x16x16xbf16, #tpu.memory_space<vmem>>, vector<1x16x16xbf16>
    %68 = vector.shape_cast %67 : vector<1x16x16xbf16> to vector<16x16xbf16>
    %cst_43 = arith.constant dense<0.000000e+00> : vector<128x16xf32>
    %69 = tpu.matmul %66, %68, %cst_43 {dimension_numbers = #tpu.dot_dimension_numbers<[1], [0], [0], [1], [0, 0, 1, 1], [], []>} : vector<128x16xbf16>, vector<16x16xbf16>, vector<128x16xf32> -> vector<128x16xf32>
    %70 = arith.addf %63, %69 : vector<128x16xf32>
    %71 = vector.extract_strided_slice %13 {offsets = [0, 2, 9, 0], sizes = [2, 8, 8, 16], strides = [1, 1, 1, 1]} : vector<2x10x17x16xf32> to vector<2x8x8x16xf32>
    %72 = vector.shape_cast %71 : vector<2x8x8x16xf32> to vector<128x16xf32>
    %73 = arith.truncf %72 : vector<128x16xf32> to vector<128x16xbf16>
    %c8_44 = arith.constant 8 : index
    %c0_45 = arith.constant 0 : index
    %c0_46 = arith.constant 0 : index
    %74 = vector.load %arg4[%c8_44, %c0_45, %c0_46] : memref<9x16x16xbf16, #tpu.memory_space<vmem>>, vector<1x16x16xbf16>
    %75 = vector.shape_cast %74 : vector<1x16x16xbf16> to vector<16x16xbf16>
    %cst_47 = arith.constant dense<0.000000e+00> : vector<128x16xf32>
    %76 = tpu.matmul %73, %75, %cst_47 {dimension_numbers = #tpu.dot_dimension_numbers<[1], [0], [0], [1], [0, 0, 1, 1], [], []>} : vector<128x16xbf16>, vector<16x16xbf16>, vector<128x16xf32> -> vector<128x16xf32>
    %77 = arith.addf %70, %76 : vector<128x16xf32>
    %c0_48 = arith.constant 0 : index
    %c0_49 = arith.constant 0 : index
    %78 = vector.load %arg5[%c0_48, %c0_49] : memref<1x16xf32, #tpu.memory_space<vmem>>, vector<1x16xf32>
    %79 = vector.broadcast %78 : vector<1x16xf32> to vector<128x16xf32>
    %80 = arith.addf %77, %79 : vector<128x16xf32>
    %cst_50 = arith.constant 0.000000e+00 : f32
    %81 = vector.broadcast %cst_50 : f32 to vector<128x16xf32>
    %82 = arith.maximumf %80, %81 : vector<128x16xf32>
    %83 = arith.truncf %82 : vector<128x16xf32> to vector<128x16xbf16>
    %c0_51 = arith.constant 0 : index
    %c0_52 = arith.constant 0 : index
    %84 = vector.load %arg6[%c0_51, %c0_52] : memref<16x64xbf16, #tpu.memory_space<vmem>>, vector<16x64xbf16>
    %cst_53 = arith.constant dense<0.000000e+00> : vector<128x64xf32>
    %85 = tpu.matmul %83, %84, %cst_53 {dimension_numbers = #tpu.dot_dimension_numbers<[1], [0], [0], [1], [0, 0, 1, 1], [], []>} : vector<128x16xbf16>, vector<16x64xbf16>, vector<128x64xf32> -> vector<128x64xf32>
    %c0_54 = arith.constant 0 : index
    %c0_55 = arith.constant 0 : index
    %86 = vector.load %arg7[%c0_54, %c0_55] : memref<1x64xf32, #tpu.memory_space<vmem>>, vector<1x64xf32>
    %87 = vector.broadcast %86 : vector<1x64xf32> to vector<128x64xf32>
    %88 = arith.addf %85, %87 : vector<128x64xf32>
    %89 = arith.addf %88, %0 : vector<128x64xf32>
    %cst_56 = arith.constant 0.000000e+00 : f32
    %90 = vector.broadcast %cst_56 : f32 to vector<128x64xf32>
    %91 = arith.maximumf %89, %90 : vector<128x64xf32>
    %c0_57 = arith.constant 0 : index
    %c0_58 = arith.constant 0 : index
    %92 = vector.load %arg8[%c0_57, %c0_58] : memref<128x64xf32, #tpu.memory_space<vmem>>, vector<128x64xf32>
    tpu.vector_store %arg8[%c0_57, %c0_58], %91 {strides = array<i32>} : memref<128x64xf32, #tpu.memory_space<vmem>>, vector<128x64xf32>,
    return
  }
  func.func @transform_0(%arg0: i32) -> (i32, i32) {
    %c0_i32 = arith.constant 0 : i32
    %c0_i32_0 = arith.constant 0 : i32
    return %arg0, %c0_i32 : i32, i32
  }
  func.func @transform_1(%arg0: i32) -> (i32, i32) {
    %c0_i32 = arith.constant 0 : i32
    %c0_i32_0 = arith.constant 0 : i32
    %c0_i32_1 = arith.constant 0 : i32
    return %c0_i32, %c0_i32_0 : i32, i32
  }
  func.func @transform_2(%arg0: i32) -> (i32, i32) {
    %c0_i32 = arith.constant 0 : i32
    %c0_i32_0 = arith.constant 0 : i32
    %c0_i32_1 = arith.constant 0 : i32
    return %c0_i32, %c0_i32_0 : i32, i32
  }
  func.func @transform_3(%arg0: i32) -> (i32, i32, i32) {
    %c0_i32 = arith.constant 0 : i32
    %c0_i32_0 = arith.constant 0 : i32
    %c0_i32_1 = arith.constant 0 : i32
    %c0_i32_2 = arith.constant 0 : i32
    return %c0_i32, %c0_i32_0, %c0_i32_1 : i32, i32, i32
  }
  func.func @transform_4(%arg0: i32) -> (i32, i32) {
    %c0_i32 = arith.constant 0 : i32
    %c0_i32_0 = arith.constant 0 : i32
    %c0_i32_1 = arith.constant 0 : i32
    return %c0_i32, %c0_i32_0 : i32, i32
  }
  func.func @transform_5(%arg0: i32) -> (i32, i32) {
    %c0_i32 = arith.constant 0 : i32
    %c0_i32_0 = arith.constant 0 : i32
    %c0_i32_1 = arith.constant 0 : i32
    return %c0_i32, %c0_i32_0 : i32, i32
  }
  func.func @transform_6(%arg0: i32) -> (i32, i32) {
    %c0_i32 = arith.constant 0 : i32
    %c0_i32_0 = arith.constant 0 : i32
    %c0_i32_1 = arith.constant 0 : i32
    return %c0_i32, %c0_i32_0 : i32, i32
  }
  func.func @transform_7(%arg0: i32) -> (i32, i32) {
    %c0_i32 = arith.constant 0 : i32
    %c0_i32_0 = arith.constant 0 : i32
    return %arg0, %c0_i32 : i32, i32
  }
}

</mosaic_0001>

<llo_original>
// kernel: bottleneck_forward.1
$region0: #{bottleneck_forward.1}
  #allocation0 [shape = 'u32[]', space=smem, size = 0x4, offset = 0x4, fixed_abs, tag = 'smem constant byte address 0x4 - core index']
  #allocation1 [shape = 'u32[72,128]{1,0:T(1,128)}', space=vmem, size = 0x9000, scoped, tag = 'internal scratch']
  #allocation2 [shape = 'f32[2,10,17,16]{3,2,1,0:T(8,128)}', space=vmem, size = 0x3c000, scoped, tag = 'scratch operand']
  %s0 = inlined_call_operand.vmem [shape: f32[256,64], index: 0, kind: input, shape index: {}]
  %s1 = inlined_call_operand.vmem [shape: bf16[64,16], index: 1, kind: input, shape index: {}]
  %s2 = inlined_call_operand.vmem [shape: f32[1,16], index: 2, kind: input, shape index: {}]
  %s3 = inlined_call_operand.vmem [shape: bf16[9,16,16], index: 3, kind: input, shape index: {}]
  %s4 = inlined_call_operand.vmem [shape: f32[1,16], index: 4, kind: input, shape index: {}]
  %s5 = inlined_call_operand.vmem [shape: bf16[16,64], index: 5, kind: input, shape index: {}]
  %s6 = inlined_call_operand.vmem [shape: f32[1,64], index: 6, kind: input, shape index: {}]
  %s7 = inlined_call_operand.hbm [shape: f32[256,64], index: 7, kind: output, shape index: {}]
  %s8 = sld [smem:[#allocation0]]
  $region61: #{bottleneck_forward.1} parent=0
    _
  %s10 = ssub.s32 1, %s8
  %s11 = scalar_select 0, %s10, %s8
  $region1: #{bottleneck_forward.1} parent=0
    #allocation3 [shape = 'u8[131072]{0}', space=vmem, size = 0x20000, scoped, tag = 'output window, operand 0']
    #allocation4 [shape = 's32[2]{0}', space=sflag, size = 0x8, scoped, tag = 'scoped memory for bottleneck_forward.1']
    %12 = vsyncpa [#allocation4], 0
    %s13 = scalar_lea.sflag [#allocation4], 1
    %14 = vsyncpa %s13, 0
    loop: start=0, step=1, limit=4
    $region2: #{bottleneck_forward.1} parent=1 // loop_pre_header
      _
    $region3: #{bottleneck_forward.1} parent=1 // loop_header
      %s16 = sphi 0, %s20
      %p17 = scmp.ge.s32.totalorder %s16, 4
      %s26 = sphi 0, %s28
      %s29 = sphi 0, %s26
      %s30 = sphi 0, %s29
      %s46 = sphi 0, %s30
      %s50 = sphi 0, %s50
      %s52 = sphi 0, %s50
      %s53 = sphi 0, %s52
      %s67 = sphi 0, %s53
      %s71 = sphi 0, %s71
      %s73 = sphi 0, %s71
      %s74 = sphi 0, %s73
      %s88 = sphi 0, %s74
      %s92 = sphi 0, %s92
      %s94 = sphi 0, %s92
      %s95 = sphi 0, %s94
      %s109 = sphi 0, %s95
      %s113 = sphi 0, %s113
      %s115 = sphi 0, %s113
      %s116 = sphi 0, %s115
      %s130 = sphi 0, %s116
      %s134 = sphi 0, %s134
      %s136 = sphi 0, %s134
      %s137 = sphi 0, %s136
      %s151 = sphi 0, %s137
      %s155 = sphi 0, %s155
      %s157 = sphi 0, %s155
      %s158 = sphi 0, %s157
      %s172 = sphi 0, %s158
      %s178 = sphi 0, %s180
      %s181 = sphi 0, %s178
      %s182 = sphi 0, %s181
      %s198 = sphi 0, %s182
    $region4: #{bottleneck_forward.1} parent=1 // loop_header_branch
      %19 = sbr.rel (%p17) target = $region8
    $region5: #{bottleneck_forward.1} parent=1 // loop_body
      %s21 = ssub.s32 %s16, 1
      %s22 = ssub.s32 %s16, 2
      %s23 = sadd.s32 %s16, 1
      %s24 = ssub.s32 %s16, %s23
      %p25 = scmp.eq.s32.totalorder %s24, 0
      %s27 = sadd.s32 %s26, 1
      %s28 = scalar_select %p25, %s26, %s27
      %p31 = pneg %p25
      %p32 = scmp.eq.s32.totalorder %s16, 1
      %p33 = por %p31, %p32
      %p34 = scmp.ne.s32.totalorder %s26, %s29
      %p35 = scmp.eq.s32.totalorder %s16, 0
      %p36 = por %p34, %p35
      %p37 = scmp.ne.s32.totalorder %s26, %s29
      %p38 = scmp.eq.s32.totalorder %s21, 1
      %p39 = por %p37, %p38
      %p40 = scmp.ne.s32.totalorder %s29, %s30
      %p41 = scmp.eq.s32.totalorder %s21, 0
      %p42 = por %p40, %p41
      %p43 = scmp.ne.s32.totalorder %s29, %s30
      %p44 = scmp.eq.s32.totalorder %s22, 1
      %p45 = por %p43, %p44
      %p47 = scmp.ne.s32.totalorder %s30, %s46
      %p48 = scmp.eq.s32.totalorder %s22, 0
      %p49 = por %p47, %p48
      %s51 = sadd.s32 %s50, 1
      %p54 = scmp.eq.s32.totalorder %s16, 1
      %p55 = scmp.ne.s32.totalorder %s50, %s52
      %p56 = scmp.eq.s32.totalorder %s16, 0
      %p57 = por %p55, %p56
      %p58 = scmp.ne.s32.totalorder %s50, %s52
      %p59 = scmp.eq.s32.totalorder %s21, 1
      %p60 = por %p58, %p59
      %p61 = scmp.ne.s32.totalorder %s52, %s53
      %p62 = scmp.eq.s32.totalorder %s21, 0
      %p63 = por %p61, %p62
      %p64 = scmp.ne.s32.totalorder %s52, %s53
      %p65 = scmp.eq.s32.totalorder %s22, 1
      %p66 = por %p64, %p65
      %p68 = scmp.ne.s32.totalorder %s53, %s67
      %p69 = scmp.eq.s32.totalorder %s22, 0
      %p70 = por %p68, %p69
      %s72 = sadd.s32 %s71, 1
      %p75 = scmp.eq.s32.totalorder %s16, 1
      %p76 = scmp.ne.s32.totalorder %s71, %s73
      %p77 = scmp.eq.s32.totalorder %s16, 0
      %p78 = por %p76, %p77
      %p79 = scmp.ne.s32.totalorder %s71, %s73
      %p80 = scmp.eq.s32.totalorder %s21, 1
      %p81 = por %p79, %p80
      %p82 = scmp.ne.s32.totalorder %s73, %s74
      %p83 = scmp.eq.s32.totalorder %s21, 0
      %p84 = por %p82, %p83
      %p85 = scmp.ne.s32.totalorder %s73, %s74
      %p86 = scmp.eq.s32.totalorder %s22, 1
      %p87 = por %p85, %p86
      %p89 = scmp.ne.s32.totalorder %s74, %s88
      %p90 = scmp.eq.s32.totalorder %s22, 0
      %p91 = por %p89, %p90
      %s93 = sadd.s32 %s92, 1
      %p96 = scmp.eq.s32.totalorder %s16, 1
      %p97 = scmp.ne.s32.totalorder %s92, %s94
      %p98 = scmp.eq.s32.totalorder %s16, 0
      %p99 = por %p97, %p98
      %p100 = scmp.ne.s32.totalorder %s92, %s94
      %p101 = scmp.eq.s32.totalorder %s21, 1
      %p102 = por %p100, %p101
      %p103 = scmp.ne.s32.totalorder %s94, %s95
      %p104 = scmp.eq.s32.totalorder %s21, 0
      %p105 = por %p103, %p104
      %p106 = scmp.ne.s32.totalorder %s94, %s95
      %p107 = scmp.eq.s32.totalorder %s22, 1
      %p108 = por %p106, %p107
      %p110 = scmp.ne.s32.totalorder %s95, %s109
      %p111 = scmp.eq.s32.totalorder %s22, 0
      %p112 = por %p110, %p111
      %s114 = sadd.s32 %s113, 1
      %p117 = scmp.eq.s32.totalorder %s16, 1
      %p118 = scmp.ne.s32.totalorder %s113, %s115
      %p119 = scmp.eq.s32.totalorder %s16, 0
      %p120 = por %p118, %p119
      %p121 = scmp.ne.s32.totalorder %s113, %s115
      %p122 = scmp.eq.s32.totalorder %s21, 1
      %p123 = por %p121, %p122
      %p124 = scmp.ne.s32.totalorder %s115, %s116
      %p125 = scmp.eq.s32.totalorder %s21, 0
      %p126 = por %p124, %p125
      %p127 = scmp.ne.s32.totalorder %s115, %s116
      %p128 = scmp.eq.s32.totalorder %s22, 1
      %p129 = por %p127, %p128
      %p131 = scmp.ne.s32.totalorder %s116, %s130
      %p132 = scmp.eq.s32.totalorder %s22, 0
      %p133 = por %p131, %p132
      %s135 = sadd.s32 %s134, 1
      %p138 = scmp.eq.s32.totalorder %s16, 1
      %p139 = scmp.ne.s32.totalorder %s134, %s136
      %p140 = scmp.eq.s32.totalorder %s16, 0
      %p141 = por %p139, %p140
      %p142 = scmp.ne.s32.totalorder %s134, %s136
      %p143 = scmp.eq.s32.totalorder %s21, 1
      %p144 = por %p142, %p143
      %p145 = scmp.ne.s32.totalorder %s136, %s137
      %p146 = scmp.eq.s32.totalorder %s21, 0
      %p147 = por %p145, %p146
      %p148 = scmp.ne.s32.totalorder %s136, %s137
      %p149 = scmp.eq.s32.totalorder %s22, 1
      %p150 = por %p148, %p149
      %p152 = scmp.ne.s32.totalorder %s137, %s151
      %p153 = scmp.eq.s32.totalorder %s22, 0
      %p154 = por %p152, %p153
      %s156 = sadd.s32 %s155, 1
      %p159 = scmp.eq.s32.totalorder %s16, 1
      %p160 = scmp.ne.s32.totalorder %s155, %s157
      %p161 = scmp.eq.s32.totalorder %s16, 0
      %p162 = por %p160, %p161
      %p163 = scmp.ne.s32.totalorder %s155, %s157
      %p164 = scmp.eq.s32.totalorder %s21, 1
      %p165 = por %p163, %p164
      %p166 = scmp.ne.s32.totalorder %s157, %s158
      %p167 = scmp.eq.s32.totalorder %s21, 0
      %p168 = por %p166, %p167
      %p169 = scmp.ne.s32.totalorder %s157, %s158
      %p170 = scmp.eq.s32.totalorder %s22, 1
      %p171 = por %p169, %p170
      %p173 = scmp.ne.s32.totalorder %s158, %s172
      %p174 = scmp.eq.s32.totalorder %s22, 0
      %p175 = por %p173, %p174
      %s176 = ssub.s32 %s16, %s23
      %p177 = scmp.eq.s32.totalorder %s176, 0
      %s179 = sadd.s32 %s178, 1
      %s180 = scalar_select %p177, %s178, %s179
      %p183 = pneg %p177
      %p184 = scmp.eq.s32.totalorder %s16, 1
      %p185 = por %p183, %p184
      %p186 = scmp.ne.s32.totalorder %s178, %s181
      %p187 = scmp.eq.s32.totalorder %s16, 0
      %p188 = por %p186, %p187
      %p189 = scmp.ne.s32.totalorder %s178, %s181
      %p190 = scmp.eq.s32.totalorder %s21, 1
      %p191 = por %p189, %p190
      %p192 = scmp.ne.s32.totalorder %s181, %s182
      %p193 = scmp.eq.s32.totalorder %s21, 0
      %p194 = por %p192, %p193
      %p195 = scmp.ne.s32.totalorder %s181, %s182
      %p196 = scmp.eq.s32.totalorder %s22, 1
      %p197 = por %p195, %p196
      %p199 = scmp.ne.s32.totalorder %s182, %s198
      %p200 = scmp.eq.s32.totalorder %s22, 0
      %p201 = por %p199, %p200
      %p202 = scmp.le.s32.totalorder 1, %s16
      %p203 = scmp.lt.s32.totalorder %s16, 3
      %p204 = pnand %p202, %p203
      %p205 = pneg %p204
      // Predicated region
      $region9: #{bottleneck_forward.1} parent=5 // pred_check
        _
      $region10: #{bottleneck_forward.1} parent=5 // pred_check_branch
        %207 = sbr.rel (%p204) target = $region12
      $region11: #{bottleneck_forward.1} parent=5 // pred_region
        %s208 = ssub.s32 %s16, 1
        // Predicated region
        $region13: #{bottleneck_forward.1} parent=11 // pred_check
          %p209 = pneg %p63
        $region14: #{bottleneck_forward.1} parent=11 // pred_check_branch
          %211 = sbr.rel (%p209) target = $region16
        $region15: #{bottleneck_forward.1} parent=11 // pred_region
          _
        $region16: #{bottleneck_forward.1} parent=11 // pred_fallthru
          _
        // Predicated region
        $region17: #{bottleneck_forward.1} parent=11 // pred_check
          %p212 = pneg %p84
        $region18: #{bottleneck_forward.1} parent=11 // pred_check_branch
          %214 = sbr.rel (%p212) target = $region20
        $region19: #{bottleneck_forward.1} parent=11 // pred_region
          _
        $region20: #{bottleneck_forward.1} parent=11 // pred_fallthru
          _
        // Predicated region
        $region21: #{bottleneck_forward.1} parent=11 // pred_check
          %p215 = pneg %p105
        $region22: #{bottleneck_forward.1} parent=11 // pred_check_branch
          %217 = sbr.rel (%p215) target = $region24
        $region23: #{bottleneck_forward.1} parent=11 // pred_region
          _
        $region24: #{bottleneck_forward.1} parent=11 // pred_fallthru
          _
        // Predicated region
        $region25: #{bottleneck_forward.1} parent=11 // pred_check
          %p218 = pneg %p126
        $region26: #{bottleneck_forward.1} parent=11 // pred_check_branch
          %220 = sbr.rel (%p218) target = $region28
        $region27: #{bottleneck_forward.1} parent=11 // pred_region
          _
        $region28: #{bottleneck_forward.1} parent=11 // pred_fallthru
          _
        // Predicated region
        $region29: #{bottleneck_forward.1} parent=11 // pred_check
          %p221 = pneg %p147
        $region30: #{bottleneck_forward.1} parent=11 // pred_check_branch
          %223 = sbr.rel (%p221) target = $region32
        $region31: #{bottleneck_forward.1} parent=11 // pred_region
          _
        $region32: #{bottleneck_forward.1} parent=11 // pred_fallthru
          _
        // Predicated region
        $region33: #{bottleneck_forward.1} parent=11 // pred_check
          %p224 = pneg %p168
        $region34: #{bottleneck_forward.1} parent=11 // pred_check_branch
          %226 = sbr.rel (%p224) target = $region36
        $region35: #{bottleneck_forward.1} parent=11 // pred_region
          _
        $region36: #{bottleneck_forward.1} parent=11 // pred_fallthru
          _
      $region12: #{bottleneck_forward.1} parent=5 // pred_fallthru
        _
      %p227 = scmp.lt.s32.totalorder %s16, 2
      // Predicated region
      $region37: #{bottleneck_forward.1} parent=5 // pred_check
        %p228 = pneg %p227
      $region38: #{bottleneck_forward.1} parent=5 // pred_check_branch
        %230 = sbr.rel (%p228) target = $region40
      $region39: #{bottleneck_forward.1} parent=5 // pred_region
        // Predicated region
        $region41: #{bottleneck_forward.1} parent=39 // pred_check
          %p231 = pneg %p36
        $region42: #{bottleneck_forward.1} parent=39 // pred_check_branch
          %233 = sbr.rel (%p231) target = $region44
        $region43: #{bottleneck_forward.1} parent=39 // pred_region
          %s234 = smul.u32 16, %s16
          %p235 = scmp.lt.s32.totalorder %s234, 31
          %s236 = scalar_select %p235, %s234, 31
          %s237 = smul.addr %s236, 8
          %s238 = scalar_lea.vmem %s0, %s237
          %s239 = smul.u32 16, %s16
        $region44: #{bottleneck_forward.1} parent=39 // pred_fallthru
          _
      $region40: #{bottleneck_forward.1} parent=5 // pred_fallthru
        _
      %p240 = scmp.le.s32.totalorder 1, %s16
      %p241 = scmp.lt.s32.totalorder %s16, 3
      %p242 = pnand %p240, %p241
      %p243 = pneg %p242
      // Predicated region
      $region45: #{bottleneck_forward.1} parent=5 // pred_check
        _
      $region46: #{bottleneck_forward.1} parent=5 // pred_check_branch
        %245 = sbr.rel (%p242) target = $region48
      $region47: #{bottleneck_forward.1} parent=5 // pred_region
        %s246 = ssub.s32 %s16, 1
        %s247 = smul.u32 16, %s21
        %p248 = scmp.lt.s32.totalorder %s247, 31
        %s249 = scalar_select %p248, %s247, 31
        %s250 = smul.addr %s249, 8
        %s251 = scalar_lea.vmem %s0, %s250
        %p252 = pneg %p42
        %p253 = pneg %p39
        %p254 = pneg %p63
        %p255 = pneg %p60
        %p256 = pneg %p84
        %p257 = pneg %p81
        %p258 = pneg %p105
        %p259 = pneg %p102
        %p260 = pneg %p126
        %p261 = pneg %p123
        %p262 = pneg %p147
        %p263 = pneg %p144
        %p264 = pneg %p168
        %p265 = pneg %p165
        %p266 = pneg %p194
        %p267 = pneg %p191
        %s268 = sand.u32 %s181, 1
        %s269 = scalar_lea.sflag [#allocation4], %s268
        %s270 = sand.u32 %s181, 1
        %s271 = smul.addr %s270, 128
        %s272 = scalar_lea.vmem [#allocation3], %s271
        %s273 = smul.u32 16, %s21
        %p274 = scmp.lt.s32.totalorder %s273, 31
        %s275 = scalar_select %p274, %s273, 31
        %s276 = smul.addr %s275, 8
        %s277 = scalar_lea.vmem %s0, %s276
        %s278 = smul.u32 16, %s21
        %s279 = smul.u32 16, %s21
        %v281 = vld [vmem:[%s277] sm:$0xff]
        %v282 = vld [vmem:[%s277 + $0x8] sm:$0xff]
        %v283 = vld [vmem:[%s277 + $0x10] sm:$0xff]
        %v284 = vld [vmem:[%s277 + $0x18] sm:$0xff]
        %v285 = vld [vmem:[%s277 + $0x20] sm:$0xff]
        %v286 = vld [vmem:[%s277 + $0x28] sm:$0xff]
        %v287 = vld [vmem:[%s277 + $0x30] sm:$0xff]
        %v288 = vld [vmem:[%s277 + $0x38] sm:$0xff]
        %v289 = vld [vmem:[%s277 + $0x40] sm:$0xff]
        %v290 = vld [vmem:[%s277 + $0x48] sm:$0xff]
        %v291 = vld [vmem:[%s277 + $0x50] sm:$0xff]
        %v292 = vld [vmem:[%s277 + $0x58] sm:$0xff]
        %v293 = vld [vmem:[%s277 + $0x60] sm:$0xff]
        %v294 = vld [vmem:[%s277 + $0x68] sm:$0xff]
        %v295 = vld [vmem:[%s277 + $0x70] sm:$0xff]
        %v296 = vld [vmem:[%s277 + $0x78] sm:$0xff]
        %v297 = vpack.c.bf16 %v282, %v281
        %v298 = vpack.c.bf16 %v284, %v283
        %v299 = vpack.c.bf16 %v286, %v285
        %v300 = vpack.c.bf16 %v288, %v287
        %v301 = vpack.c.bf16 %v290, %v289
        %v302 = vpack.c.bf16 %v292, %v291
        %v303 = vpack.c.bf16 %v294, %v293
        %v304 = vpack.c.bf16 %v296, %v295
        %v305 = vld [vmem:[%s1] sm:$0xf]
        %v306 = vld [vmem:[%s1 + $0x4] sm:$0xf]
        %v307 = vld [vmem:[%s1 + $0x8] sm:$0xf]
        %v308 = vld [vmem:[%s1 + $0xc] sm:$0xf]
        %v309 = vld [vmem:[%s1 + $0x10] sm:$0xf]
        %v310 = vld [vmem:[%s1 + $0x14] sm:$0xf]
        %v311 = vld [vmem:[%s1 + $0x18] sm:$0xf]
        %v312 = vld [vmem:[%s1 + $0x1c] sm:$0xf]
        %v313 = vld [vmem:[%s2] sm:$0x1]
        %v315 = vperm.slane %v313, 0
        %v325 = vunpack.c.l.b16 %v305
        %v326 = vunpack.c.l.b16 %v306
        %v327 = vunpack.c.l.b16 %v307
        %v328 = vunpack.c.l.b16 %v308
        %v329 = vunpack.c.l.b16 %v309
        %v330 = vunpack.c.l.b16 %v310
        %v331 = vunpack.c.l.b16 %v311
        %v332 = vunpack.c.l.b16 %v312
        %v333 = vpack.c.b16 %v326, %v325
        %v334 = vpack.c.b16 %v328, %v327
        %v335 = vpack.c.b16 %v330, %v329
        %v336 = vpack.c.b16 %v332, %v331
        %vm341 = vcmask 523264
        %v343 = vsel %vm341, %v297, 0
        %v346 = vsel %vm341, %v298, 0
        %v349 = vsel %vm341, %v299, 0
        %v352 = vsel %vm341, %v300, 0
        %v355 = vsel %vm341, %v301, 0
        %v358 = vsel %vm341, %v302, 0
        %v361 = vsel %vm341, %v303, 0
        %v364 = vsel %vm341, %v304, 0
        %366 = vmatpush.bf16.msra.mxu0 0
        %367 = vmatpush.bf16.msra.mxu0 0
        %368 = vmatpush.bf16.msra.mxu0 0
        %369 = vmatpush.bf16.msra.mxu0 0
        %370 = vmatpush.bf16.msra.mxu0 %v336
        %371 = vmatpush.bf16.msra.mxu0 %v335
        %372 = vmatpush.bf16.msra.mxu0 %v334
        %373 = vmatpush.bf16.msra.mxu0 %v333
        %374 = vmatmul.bf16.gmra.mxu0 %v343
        %v375 = vpop.f32.mrf.mxu0
        %v376 = vadd.f32 %v315, %v375
        %v377 = vpop.f32.mrf.mxu0
        %v378 = vadd.f32 %v315, %v377
        %379 = vmatmul.bf16.gmra.mxu0 %v346
        %v380 = vpop.f32.mrf.mxu0
        %v381 = vadd.f32 %v315, %v380
        %v382 = vpop.f32.mrf.mxu0
        %v383 = vadd.f32 %v315, %v382
        %384 = vmatmul.bf16.gmra.mxu0 %v349
        %v385 = vpop.f32.mrf.mxu0
        %v386 = vadd.f32 %v315, %v385
        %v387 = vpop.f32.mrf.mxu0
        %v388 = vadd.f32 %v315, %v387
        %389 = vmatmul.bf16.gmra.mxu0 %v352
        %v390 = vpop.f32.mrf.mxu0
        %v391 = vadd.f32 %v315, %v390
        %v392 = vpop.f32.mrf.mxu0
        %v393 = vadd.f32 %v315, %v392
        %394 = vmatmul.bf16.gmra.mxu0 %v355
        %v395 = vpop.f32.mrf.mxu0
        %v396 = vadd.f32 %v315, %v395
        %v397 = vpop.f32.mrf.mxu0
        %v398 = vadd.f32 %v315, %v397
        %399 = vmatmul.bf16.gmra.mxu0 %v358
        %v400 = vpop.f32.mrf.mxu0
        %v401 = vadd.f32 %v315, %v400
        %v402 = vpop.f32.mrf.mxu0
        %v403 = vadd.f32 %v315, %v402
        %404 = vmatmul.bf16.gmra.mxu0 %v361
        %v405 = vpop.f32.mrf.mxu0
        %v406 = vadd.f32 %v315, %v405
        %v407 = vpop.f32.mrf.mxu0
        %v408 = vadd.f32 %v315, %v407
        %409 = vmatmul.bf16.gmra.mxu0 %v364
        %v410 = vpop.f32.mrf.mxu0
        %v411 = vadd.f32 %v315, %v410
        %v412 = vpop.f32.mrf.mxu0
        %v413 = vadd.f32 %v315, %v412
        %414 = vdwg.mxu0
        %v415 = vmax.f32 %v376, 0.0
        %v416 = vmax.f32 %v378, 0.0
        %v417 = vmax.f32 %v381, 0.0
        %v418 = vmax.f32 %v383, 0.0
        %v419 = vmax.f32 %v386, 0.0
        %v420 = vmax.f32 %v388, 0.0
        %v421 = vmax.f32 %v391, 0.0
        %v422 = vmax.f32 %v393, 0.0
        %v423 = vmax.f32 %v396, 0.0
        %v424 = vmax.f32 %v398, 0.0
        %v425 = vmax.f32 %v401, 0.0
        %v426 = vmax.f32 %v403, 0.0
        %v427 = vmax.f32 %v406, 0.0
        %v428 = vmax.f32 %v408, 0.0
        %v429 = vmax.f32 %v411, 0.0
        %v430 = vmax.f32 %v413, 0.0
        %vm431 = vcmask 130048
        %432 = vst.msk [vmem:[#allocation2] sm:$0xff] %vm431, 0.0
        %433 = vst.msk [vmem:[#allocation2 + $0x8] sm:$0xff] %vm431, 0.0
        %vm434 = vcmask 122880
        %435 = vst.msk [vmem:[#allocation2 + $0x10] sm:$0x1] %vm434, 0.0
        %436 = vst.msk [vmem:[#allocation2 + $0x18] sm:$0xff] %vm431, 0.0
        %437 = vst.msk [vmem:[#allocation2 + $0x20] sm:$0xff] %vm431, 0.0
        %438 = vst.msk [vmem:[#allocation2 + $0x28] sm:$0x1] %vm434, 0.0
        %439 = vst.msk [vmem:[#allocation2 + $0x30] sm:$0xff] %vm431, 0.0
        %440 = vst.msk [vmem:[#allocation2 + $0x38] sm:$0xff] %vm431, 0.0
        %441 = vst.msk [vmem:[#allocation2 + $0x40] sm:$0x1] %vm434, 0.0
        %442 = vst.msk [vmem:[#allocation2 + $0x48] sm:$0xff] %vm431, 0.0
        %443 = vst.msk [vmem:[#allocation2 + $0x50] sm:$0xff] %vm431, 0.0
        %444 = vst.msk [vmem:[#allocation2 + $0x58] sm:$0x1] %vm434, 0.0
        %445 = vst.msk [vmem:[#allocation2 + $0x60] sm:$0xff] %vm431, 0.0
        %446 = vst.msk [vmem:[#allocation2 + $0x68] sm:$0xff] %vm431, 0.0
        %447 = vst.msk [vmem:[#allocation2 + $0x70] sm:$0x1] %vm434, 0.0
        %448 = vst.msk [vmem:[#allocation2 + $0x78] sm:$0xff] %vm431, 0.0
        %449 = vst.msk [vmem:[#allocation2 + $0x80] sm:$0xff] %vm431, 0.0
        %450 = vst.msk [vmem:[#allocation2 + $0x88] sm:$0x1] %vm434, 0.0
        %451 = vst.msk [vmem:[#allocation2 + $0x90] sm:$0xff] %vm431, 0.0
        %452 = vst.msk [vmem:[#allocation2 + $0x98] sm:$0xff] %vm431, 0.0
        %453 = vst.msk [vmem:[#allocation2 + $0xa0] sm:$0x1] %vm434, 0.0
        %454 = vst.msk [vmem:[#allocation2 + $0xa8] sm:$0xff] %vm431, 0.0
        %455 = vst.msk [vmem:[#allocation2 + $0xb0] sm:$0xff] %vm431, 0.0
        %456 = vst.msk [vmem:[#allocation2 + $0xb8] sm:$0x1] %vm434, 0.0
        %457 = vst.msk [vmem:[#allocation2 + $0xc0] sm:$0xff] %vm431, 0.0
        %458 = vst.msk [vmem:[#allocation2 + $0xc8] sm:$0xff] %vm431, 0.0
        %459 = vst.msk [vmem:[#allocation2 + $0xd0] sm:$0x1] %vm434, 0.0
        %460 = vst.msk [vmem:[#allocation2 + $0xd8] sm:$0xff] %vm431, 0.0
        %461 = vst.msk [vmem:[#allocation2 + $0xe0] sm:$0xff] %vm431, 0.0
        %462 = vst.msk [vmem:[#allocation2 + $0xe8] sm:$0x1] %vm434, 0.0
        %463 = vst.msk [vmem:[#allocation2 + $0xf0] sm:$0xff] %vm431, 0.0
        %464 = vst.msk [vmem:[#allocation2 + $0xf8] sm:$0xff] %vm431, 0.0
        %465 = vst.msk [vmem:[#allocation2 + $0x100] sm:$0x1] %vm434, 0.0
        %466 = vst.msk [vmem:[#allocation2 + $0x108] sm:$0xff] %vm431, 0.0
        %467 = vst.msk [vmem:[#allocation2 + $0x110] sm:$0xff] %vm431, 0.0
        %468 = vst.msk [vmem:[#allocation2 + $0x118] sm:$0x1] %vm434, 0.0
        %469 = vst.msk [vmem:[#allocation2 + $0x120] sm:$0xff] %vm431, 0.0
        %470 = vst.msk [vmem:[#allocation2 + $0x128] sm:$0xff] %vm431, 0.0
        %471 = vst.msk [vmem:[#allocation2 + $0x130] sm:$0x1] %vm434, 0.0
        %472 = vst.msk [vmem:[#allocation2 + $0x138] sm:$0xff] %vm431, 0.0
        %473 = vst.msk [vmem:[#allocation2 + $0x140] sm:$0xff] %vm431, 0.0
        %474 = vst.msk [vmem:[#allocation2 + $0x148] sm:$0x1] %vm434, 0.0
        %475 = vst.msk [vmem:[#allocation2 + $0x150] sm:$0xff] %vm431, 0.0
        %476 = vst.msk [vmem:[#allocation2 + $0x158] sm:$0xff] %vm431, 0.0
        %477 = vst.msk [vmem:[#allocation2 + $0x160] sm:$0x1] %vm434, 0.0
        %478 = vst.msk [vmem:[#allocation2 + $0x168] sm:$0xff] %vm431, 0.0
        %479 = vst.msk [vmem:[#allocation2 + $0x170] sm:$0xff] %vm431, 0.0
        %480 = vst.msk [vmem:[#allocation2 + $0x178] sm:$0x1] %vm434, 0.0
        %481 = vst.msk [vmem:[#allocation2 + $0x180] sm:$0xff] %vm431, 0.0
        %482 = vst.msk [vmem:[#allocation2 + $0x188] sm:$0xff] %vm431, 0.0
        %483 = vst.msk [vmem:[#allocation2 + $0x190] sm:$0x1] %vm434, 0.0
        %484 = vst.msk [vmem:[#allocation2 + $0x198] sm:$0xff] %vm431, 0.0
        %485 = vst.msk [vmem:[#allocation2 + $0x1a0] sm:$0xff] %vm431, 0.0
        %486 = vst.msk [vmem:[#allocation2 + $0x1a8] sm:$0x1] %vm434, 0.0
        %487 = vst.msk [vmem:[#allocation2 + $0x1b0] sm:$0xff] %vm431, 0.0
        %488 = vst.msk [vmem:[#allocation2 + $0x1b8] sm:$0xff] %vm431, 0.0
        %489 = vst.msk [vmem:[#allocation2 + $0x1c0] sm:$0x1] %vm434, 0.0
        %490 = vst.msk [vmem:[#allocation2 + $0x1c8] sm:$0xff] %vm431, 0.0
        %491 = vst.msk [vmem:[#allocation2 + $0x1d0] sm:$0xff] %vm431, 0.0
        %492 = vst.msk [vmem:[#allocation2 + $0x1d8] sm:$0x1] %vm434, 0.0
        %s493 = scalar_lea.vmem [#allocation2], 24
        %494 = vst.msk [vmem:[%s493 + $0x8] sm:$0xff] %vm431, %v415
        %495 = vst.msk [vmem:[%s493 + $0x20] sm:$0xff] %vm431, %v416
        %496 = vst.msk [vmem:[%s493 + $0x38] sm:$0xff] %vm431, %v417
        %497 = vst.msk [vmem:[%s493 + $0x50] sm:$0xff] %vm431, %v418
        %498 = vst.msk [vmem:[%s493 + $0x68] sm:$0xff] %vm431, %v419
        %499 = vst.msk [vmem:[%s493 + $0x80] sm:$0xff] %vm431, %v420
        %500 = vst.msk [vmem:[%s493 + $0x98] sm:$0xff] %vm431, %v421
        %501 = vst.msk [vmem:[%s493 + $0xb0] sm:$0xff] %vm431, %v422
        %502 = vst.msk [vmem:[%s493 + $0xf8] sm:$0xff] %vm431, %v423
        %503 = vst.msk [vmem:[%s493 + $0x110] sm:$0xff] %vm431, %v424
        %504 = vst.msk [vmem:[%s493 + $0x128] sm:$0xff] %vm431, %v425
        %505 = vst.msk [vmem:[%s493 + $0x140] sm:$0xff] %vm431, %v426
        %506 = vst.msk [vmem:[%s493 + $0x158] sm:$0xff] %vm431, %v427
        %507 = vst.msk [vmem:[%s493 + $0x170] sm:$0xff] %vm431, %v428
        %508 = vst.msk [vmem:[%s493 + $0x188] sm:$0xff] %vm431, %v429
        %509 = vst.msk [vmem:[%s493 + $0x1a0] sm:$0xff] %vm431, %v430
        %v510 = vld [vmem:[#allocation2] sm:$0xff]
        %v511 = vld [vmem:[#allocation2 + $0x8] sm:$0xff]
        %v512 = vld [vmem:[#allocation2 + $0x10] sm:$0x1]
        %v513 = vld [vmem:[#allocation2 + $0x18] sm:$0xff]
        %v514 = vld [vmem:[#allocation2 + $0x20] sm:$0xff]
        %v515 = vld [vmem:[#allocation2 + $0x28] sm:$0x1]
        %v516 = vld [vmem:[#allocation2 + $0x30] sm:$0xff]
        %v517 = vld [vmem:[#allocation2 + $0x38] sm:$0xff]
        %v518 = vld [vmem:[#allocation2 + $0x40] sm:$0x1]
        %v519 = vld [vmem:[#allocation2 + $0x48] sm:$0xff]
        %v520 = vld [vmem:[#allocation2 + $0x50] sm:$0xff]
        %v521 = vld [vmem:[#allocation2 + $0x58] sm:$0x1]
        %v522 = vld [vmem:[#allocation2 + $0x60] sm:$0xff]
        %v523 = vld [vmem:[#allocation2 + $0x68] sm:$0xff]
        %v524 = vld [vmem:[#allocation2 + $0x70] sm:$0x1]
        %v525 = vld [vmem:[#allocation2 + $0x78] sm:$0xff]
        %v526 = vld [vmem:[#allocation2 + $0x80] sm:$0xff]
        %v527 = vld [vmem:[#allocation2 + $0x88] sm:$0x1]
        %v528 = vld [vmem:[#allocation2 + $0x90] sm:$0xff]
        %v529 = vld [vmem:[#allocation2 + $0x98] sm:$0xff]
        %v530 = vld [vmem:[#allocation2 + $0xa0] sm:$0x1]
        %v531 = vld [vmem:[#allocation2 + $0xa8] sm:$0xff]
        %v532 = vld [vmem:[#allocation2 + $0xb0] sm:$0xff]
        %v533 = vld [vmem:[#allocation2 + $0xb8] sm:$0x1]
        %v534 = vld [vmem:[#allocation2 + $0xc0] sm:$0xff]
        %v535 = vld [vmem:[#allocation2 + $0xc8] sm:$0xff]
        %v536 = vld [vmem:[#allocation2 + $0xd0] sm:$0x1]
        %v537 = vld [vmem:[#allocation2 + $0xd8] sm:$0xff]
        %v538 = vld [vmem:[#allocation2 + $0xe0] sm:$0xff]
        %v539 = vld [vmem:[#allocation2 + $0xe8] sm:$0x1]
        %v540 = vld [vmem:[#allocation2 + $0xf0] sm:$0xff]
        %v541 = vld [vmem:[#allocation2 + $0xf8] sm:$0xff]
        %v542 = vld [vmem:[#allocation2 + $0x100] sm:$0x1]
        %v543 = vld [vmem:[#allocation2 + $0x108] sm:$0xff]
        %v544 = vld [vmem:[#allocation2 + $0x110] sm:$0xff]
        %v545 = vld [vmem:[#allocation2 + $0x118] sm:$0x1]
        %v546 = vld [vmem:[#allocation2 + $0x120] sm:$0xff]
        %v547 = vld [vmem:[#allocation2 + $0x128] sm:$0xff]
        %v548 = vld [vmem:[#allocation2 + $0x130] sm:$0x1]
        %v549 = vld [vmem:[#allocation2 + $0x138] sm:$0xff]
        %v550 = vld [vmem:[#allocation2 + $0x140] sm:$0xff]
        %v551 = vld [vmem:[#allocation2 + $0x148] sm:$0x1]
        %v552 = vld [vmem:[#allocation2 + $0x150] sm:$0xff]
        %v553 = vld [vmem:[#allocation2 + $0x158] sm:$0xff]
        %v554 = vld [vmem:[#allocation2 + $0x160] sm:$0x1]
        %v555 = vld [vmem:[#allocation2 + $0x168] sm:$0xff]
        %v556 = vld [vmem:[#allocation2 + $0x170] sm:$0xff]
        %v557 = vld [vmem:[#allocation2 + $0x178] sm:$0x1]
        %v558 = vld [vmem:[#allocation2 + $0x180] sm:$0xff]
        %v559 = vld [vmem:[#allocation2 + $0x188] sm:$0xff]
        %v560 = vld [vmem:[#allocation2 + $0x190] sm:$0x1]
        %v561 = vld [vmem:[#allocation2 + $0x198] sm:$0xff]
        %v562 = vld [vmem:[#allocation2 + $0x1a0] sm:$0xff]
        %v563 = vld [vmem:[#allocation2 + $0x1a8] sm:$0x1]
        %v564 = vld [vmem:[#allocation2 + $0x1b0] sm:$0xff]
        %v565 = vld [vmem:[#allocation2 + $0x1b8] sm:$0xff]
        %v566 = vld [vmem:[#allocation2 + $0x1c0] sm:$0x1]
        %v567 = vld [vmem:[#allocation2 + $0x1c8] sm:$0xff]
        %v568 = vld [vmem:[#allocation2 + $0x1d0] sm:$0xff]
        %v569 = vld [vmem:[#allocation2 + $0x1d8] sm:$0x1]
        %vm602 = vcmask 1040384
        %v603 = vrot.slane %v510, 7
        %v604 = vrot.slane %v511, 7
        %v605 = vsel %vm602, %v603, %v604
        %v606 = vrot.slane %v513, 7
        %v607 = vrot.slane %v514, 7
        %v608 = vsel %vm602, %v606, %v607
        %v609 = vrot.slane %v516, 7
        %v610 = vrot.slane %v517, 7
        %v611 = vsel %vm602, %v609, %v610
        %v612 = vrot.slane %v519, 7
        %v613 = vrot.slane %v520, 7
        %v614 = vsel %vm602, %v612, %v613
        %v615 = vrot.slane %v522, 7
        %v616 = vrot.slane %v523, 7
        %v617 = vsel %vm602, %v615, %v616
        %v618 = vrot.slane %v525, 7
        %v619 = vrot.slane %v526, 7
        %v620 = vsel %vm602, %v618, %v619
        %v621 = vrot.slane %v528, 7
        %v622 = vrot.slane %v529, 7
        %v623 = vsel %vm602, %v621, %v622
        %v624 = vrot.slane %v531, 7
        %v625 = vrot.slane %v532, 7
        %v626 = vsel %vm602, %v624, %v625
        %v627 = vrot.slane %v540, 7
        %v628 = vrot.slane %v541, 7
        %v629 = vsel %vm602, %v627, %v628
        %v630 = vrot.slane %v543, 7
        %v631 = vrot.slane %v544, 7
        %v632 = vsel %vm602, %v630, %v631
        %v633 = vrot.slane %v546, 7
        %v634 = vrot.slane %v547, 7
        %v635 = vsel %vm602, %v633, %v634
        %v636 = vrot.slane %v549, 7
        %v637 = vrot.slane %v550, 7
        %v638 = vsel %vm602, %v636, %v637
        %v639 = vrot.slane %v552, 7
        %v640 = vrot.slane %v553, 7
        %v641 = vsel %vm602, %v639, %v640
        %v642 = vrot.slane %v555, 7
        %v643 = vrot.slane %v556, 7
        %v644 = vsel %vm602, %v642, %v643
        %v645 = vrot.slane %v558, 7
        %v646 = vrot.slane %v559, 7
        %v647 = vsel %vm602, %v645, %v646
        %v648 = vrot.slane %v561, 7
        %v649 = vrot.slane %v562, 7
        %v650 = vsel %vm602, %v648, %v649
        %v667 = vpack.c.bf16 %v608, %v605
        %v668 = vpack.c.bf16 %v614, %v611
        %v669 = vpack.c.bf16 %v620, %v617
        %v670 = vpack.c.bf16 %v626, %v623
        %v671 = vpack.c.bf16 %v632, %v629
        %v672 = vpack.c.bf16 %v638, %v635
        %v673 = vpack.c.bf16 %v644, %v641
        %v674 = vpack.c.bf16 %v650, %v647
        %v675 = vld [vmem:[%s3] sm:$0xf]
        %v676 = vld [vmem:[%s3 + $0x4] sm:$0xf]
        %v677 = vpack.c.bf16 %v514, %v511
        %v678 = vpack.c.bf16 %v520, %v517
        %v679 = vpack.c.bf16 %v526, %v523
        %v680 = vpack.c.bf16 %v532, %v529
        %v681 = vpack.c.bf16 %v544, %v541
        %v682 = vpack.c.bf16 %v550, %v547
        %v683 = vpack.c.bf16 %v556, %v553
        %v684 = vpack.c.bf16 %v562, %v559
        %s685 = scalar_lea.vmem %s3, 8
        %v686 = vld [vmem:[%s685] sm:$0xf]
        %v687 = vld [vmem:[%s685 + $0x4] sm:$0xf]
        %v690 = vunpack.c.l.b16 %v686
        %v691 = vunpack.c.l.b16 %v687
        %v692 = vpack.c.b16 %v691, %v690
        %v695 = vsel %vm431, %v677, 0
        %v698 = vsel %vm431, %v678, 0
        %v701 = vsel %vm431, %v679, 0
        %v704 = vsel %vm431, %v680, 0
        %v707 = vsel %vm431, %v681, 0
        %v710 = vsel %vm431, %v682, 0
        %v713 = vsel %vm431, %v683, 0
        %v716 = vsel %vm431, %v684, 0
        %718 = vmatpush.bf16.msra.mxu0 0
        %719 = vmatpush.bf16.msra.mxu0 0
        %720 = vmatpush.bf16.msra.mxu0 0
        %721 = vmatpush.bf16.msra.mxu0 0
        %722 = vmatpush.bf16.msra.mxu0 0
        %723 = vmatpush.bf16.msra.mxu0 0
        %724 = vmatpush.bf16.msra.mxu0 0
        %725 = vmatpush.bf16.msra.mxu0 %v692
        %726 = vmatmul.bf16.gmra.mxu0 %v695
        %v727 = vpop.f32.mrf.mxu0
        %v728 = vadd.f32 0.0, %v727
        %v729 = vpop.f32.mrf.mxu0
        %v730 = vadd.f32 0.0, %v729
        %731 = vmatmul.bf16.gmra.mxu0 %v698
        %v732 = vpop.f32.mrf.mxu0
        %v733 = vadd.f32 0.0, %v732
        %v734 = vpop.f32.mrf.mxu0
        %v735 = vadd.f32 0.0, %v734
        %736 = vmatmul.bf16.gmra.mxu0 %v701
        %v737 = vpop.f32.mrf.mxu0
        %v738 = vadd.f32 0.0, %v737
        %v739 = vpop.f32.mrf.mxu0
        %v740 = vadd.f32 0.0, %v739
        %741 = vmatmul.bf16.gmra.mxu0 %v704
        %v742 = vpop.f32.mrf.mxu0
        %v743 = vadd.f32 0.0, %v742
        %v744 = vpop.f32.mrf.mxu0
        %v745 = vadd.f32 0.0, %v744
        %746 = vmatmul.bf16.gmra.mxu0 %v707
        %v747 = vpop.f32.mrf.mxu0
        %v748 = vadd.f32 0.0, %v747
        %v749 = vpop.f32.mrf.mxu0
        %v750 = vadd.f32 0.0, %v749
        %751 = vmatmul.bf16.gmra.mxu0 %v710
        %v752 = vpop.f32.mrf.mxu0
        %v753 = vadd.f32 0.0, %v752
        %v754 = vpop.f32.mrf.mxu0
        %v755 = vadd.f32 0.0, %v754
        %756 = vmatmul.bf16.gmra.mxu0 %v713
        %v757 = vpop.f32.mrf.mxu0
        %v758 = vadd.f32 0.0, %v757
        %v759 = vpop.f32.mrf.mxu0
        %v760 = vadd.f32 0.0, %v759
        %761 = vmatmul.bf16.gmra.mxu0 %v716
        %v762 = vpop.f32.mrf.mxu0
        %v763 = vadd.f32 0.0, %v762
        %v764 = vpop.f32.mrf.mxu0
        %v765 = vadd.f32 0.0, %v764
        %766 = vdwg.mxu0
        %v769 = vunpack.c.l.b16 %v675
        %v770 = vunpack.c.l.b16 %v676
        %v771 = vpack.c.b16 %v770, %v769
        %v774 = vsel %vm431, %v667, 0
        %v777 = vsel %vm431, %v668, 0
        %v780 = vsel %vm431, %v669, 0
        %v783 = vsel %vm431, %v670, 0
        %v786 = vsel %vm431, %v671, 0
        %v789 = vsel %vm431, %v672, 0
        %v792 = vsel %vm431, %v673, 0
        %v795 = vsel %vm431, %v674, 0
        %797 = vmatpush.bf16.msra.mxu0 0
        %798 = vmatpush.bf16.msra.mxu0 0
        %799 = vmatpush.bf16.msra.mxu0 0
        %800 = vmatpush.bf16.msra.mxu0 0
        %801 = vmatpush.bf16.msra.mxu0 0
        %802 = vmatpush.bf16.msra.mxu0 0
        %803 = vmatpush.bf16.msra.mxu0 0
        %804 = vmatpush.bf16.msra.mxu0 %v771
        %805 = vmatmul.bf16.gmra.mxu0 %v774
        %v806 = vpop.f32.mrf.mxu0
        %v807 = vadd.f32 %v728, %v806
        %v808 = vpop.f32.mrf.mxu0
        %v809 = vadd.f32 %v730, %v808
        %810 = vmatmul.bf16.gmra.mxu0 %v777
        %v811 = vpop.f32.mrf.mxu0
        %v812 = vadd.f32 %v733, %v811
        %v813 = vpop.f32.mrf.mxu0
        %v814 = vadd.f32 %v735, %v813
        %815 = vmatmul.bf16.gmra.mxu0 %v780
        %v816 = vpop.f32.mrf.mxu0
        %v817 = vadd.f32 %v738, %v816
        %v818 = vpop.f32.mrf.mxu0
        %v819 = vadd.f32 %v740, %v818
        %820 = vmatmul.bf16.gmra.mxu0 %v783
        %v821 = vpop.f32.mrf.mxu0
        %v822 = vadd.f32 %v743, %v821
        %v823 = vpop.f32.mrf.mxu0
        %v824 = vadd.f32 %v745, %v823
        %825 = vmatmul.bf16.gmra.mxu0 %v786
        %v826 = vpop.f32.mrf.mxu0
        %v827 = vadd.f32 %v748, %v826
        %v828 = vpop.f32.mrf.mxu0
        %v829 = vadd.f32 %v750, %v828
        %830 = vmatmul.bf16.gmra.mxu0 %v789
        %v831 = vpop.f32.mrf.mxu0
        %v832 = vadd.f32 %v753, %v831
        %v833 = vpop.f32.mrf.mxu0
        %v834 = vadd.f32 %v755, %v833
        %835 = vmatmul.bf16.gmra.mxu0 %v792
        %v836 = vpop.f32.mrf.mxu0
        %v837 = vadd.f32 %v758, %v836
        %v838 = vpop.f32.mrf.mxu0
        %v839 = vadd.f32 %v760, %v838
        %840 = vmatmul.bf16.gmra.mxu0 %v795
        %v841 = vpop.f32.mrf.mxu0
        %v842 = vadd.f32 %v763, %v841
        %v843 = vpop.f32.mrf.mxu0
        %v844 = vadd.f32 %v765, %v843
        %845 = vdwg.mxu0
        %vm862 = vcmask 1046528
        %v863 = vrot.slane %v511, 1
        %v864 = vrot.slane %v512, 1
        %v865 = vsel %vm862, %v863, %v864
        %v866 = vrot.slane %v514, 1
        %v867 = vrot.slane %v515, 1
        %v868 = vsel %vm862, %v866, %v867
        %v869 = vrot.slane %v517, 1
        %v870 = vrot.slane %v518, 1
        %v871 = vsel %vm862, %v869, %v870
        %v872 = vrot.slane %v520, 1
        %v873 = vrot.slane %v521, 1
        %v874 = vsel %vm862, %v872, %v873
        %v875 = vrot.slane %v523, 1
        %v876 = vrot.slane %v524, 1
        %v877 = vsel %vm862, %v875, %v876
        %v878 = vrot.slane %v526, 1
        %v879 = vrot.slane %v527, 1
        %v880 = vsel %vm862, %v878, %v879
        %v881 = vrot.slane %v529, 1
        %v882 = vrot.slane %v530, 1
        %v883 = vsel %vm862, %v881, %v882
        %v884 = vrot.slane %v532, 1
        %v885 = vrot.slane %v533, 1
        %v886 = vsel %vm862, %v884, %v885
        %v887 = vrot.slane %v541, 1
        %v888 = vrot.slane %v542, 1
        %v889 = vsel %vm862, %v887, %v888
        %v890 = vrot.slane %v544, 1
        %v891 = vrot.slane %v545, 1
        %v892 = vsel %vm862, %v890, %v891
        %v893 = vrot.slane %v547, 1
        %v894 = vrot.slane %v548, 1
        %v895 = vsel %vm862, %v893, %v894
        %v896 = vrot.slane %v550, 1
        %v897 = vrot.slane %v551, 1
        %v898 = vsel %vm862, %v896, %v897
        %v899 = vrot.slane %v553, 1
        %v900 = vrot.slane %v554, 1
        %v901 = vsel %vm862, %v899, %v900
        %v902 = vrot.slane %v556, 1
        %v903 = vrot.slane %v557, 1
        %v904 = vsel %vm862, %v902, %v903
        %v905 = vrot.slane %v559, 1
        %v906 = vrot.slane %v560, 1
        %v907 = vsel %vm862, %v905, %v906
        %v908 = vrot.slane %v562, 1
        %v909 = vrot.slane %v563, 1
        %v910 = vsel %vm862, %v908, %v909
        %v927 = vpack.c.bf16 %v868, %v865
        %v928 = vpack.c.bf16 %v874, %v871
        %v929 = vpack.c.bf16 %v880, %v877
        %v930 = vpack.c.bf16 %v886, %v883
        %v931 = vpack.c.bf16 %v892, %v889
        %v932 = vpack.c.bf16 %v898, %v895
        %v933 = vpack.c.bf16 %v904, %v901
        %v934 = vpack.c.bf16 %v910, %v907
        %s935 = scalar_lea.vmem %s3, 16
        %v936 = vld [vmem:[%s935] sm:$0xf]
        %v937 = vld [vmem:[%s935 + $0x4] sm:$0xf]
        %v940 = vunpack.c.l.b16 %v936
        %v941 = vunpack.c.l.b16 %v937
        %v942 = vpack.c.b16 %v941, %v940
        %v945 = vsel %vm431, %v927, 0
        %v948 = vsel %vm431, %v928, 0
        %v951 = vsel %vm431, %v929, 0
        %v954 = vsel %vm431, %v930, 0
        %v957 = vsel %vm431, %v931, 0
        %v960 = vsel %vm431, %v932, 0
        %v963 = vsel %vm431, %v933, 0
        %v966 = vsel %vm431, %v934, 0
        %968 = vmatpush.bf16.msra.mxu0 0
        %969 = vmatpush.bf16.msra.mxu0 0
        %970 = vmatpush.bf16.msra.mxu0 0
        %971 = vmatpush.bf16.msra.mxu0 0
        %972 = vmatpush.bf16.msra.mxu0 0
        %973 = vmatpush.bf16.msra.mxu0 0
        %974 = vmatpush.bf16.msra.mxu0 0
        %975 = vmatpush.bf16.msra.mxu0 %v942
        %976 = vmatmul.bf16.gmra.mxu0 %v945
        %v977 = vpop.f32.mrf.mxu0
        %v978 = vadd.f32 0.0, %v977
        %v979 = vpop.f32.mrf.mxu0
        %v980 = vadd.f32 0.0, %v979
        %981 = vmatmul.bf16.gmra.mxu0 %v948
        %v982 = vpop.f32.mrf.mxu0
        %v983 = vadd.f32 0.0, %v982
        %v984 = vpop.f32.mrf.mxu0
        %v985 = vadd.f32 0.0, %v984
        %986 = vmatmul.bf16.gmra.mxu0 %v951
        %v987 = vpop.f32.mrf.mxu0
        %v988 = vadd.f32 0.0, %v987
        %v989 = vpop.f32.mrf.mxu0
        %v990 = vadd.f32 0.0, %v989
        %991 = vmatmul.bf16.gmra.mxu0 %v954
        %v992 = vpop.f32.mrf.mxu0
        %v993 = vadd.f32 0.0, %v992
        %v994 = vpop.f32.mrf.mxu0
        %v995 = vadd.f32 0.0, %v994
        %996 = vmatmul.bf16.gmra.mxu0 %v957
        %v997 = vpop.f32.mrf.mxu0
        %v998 = vadd.f32 0.0, %v997
        %v999 = vpop.f32.mrf.mxu0
        %v1000 = vadd.f32 0.0, %v999
        %1001 = vmatmul.bf16.gmra.mxu0 %v960
        %v1002 = vpop.f32.mrf.mxu0
        %v1003 = vadd.f32 0.0, %v1002
        %v1004 = vpop.f32.mrf.mxu0
        %v1005 = vadd.f32 0.0, %v1004
        %1006 = vmatmul.bf16.gmra.mxu0 %v963
        %v1007 = vpop.f32.mrf.mxu0
        %v1008 = vadd.f32 0.0, %v1007
        %v1009 = vpop.f32.mrf.mxu0
        %v1010 = vadd.f32 0.0, %v1009
        %1011 = vmatmul.bf16.gmra.mxu0 %v966
        %v1012 = vpop.f32.mrf.mxu0
        %v1013 = vadd.f32 0.0, %v1012
        %v1014 = vpop.f32.mrf.mxu0
        %v1015 = vadd.f32 0.0, %v1014
        %1016 = vdwg.mxu0
        %v1017 = vadd.f32 %v807, %v978
        %v1018 = vadd.f32 %v809, %v980
        %v1019 = vadd.f32 %v812, %v983
        %v1020 = vadd.f32 %v814, %v985
        %v1021 = vadd.f32 %v817, %v988
        %v1022 = vadd.f32 %v819, %v990
        %v1023 = vadd.f32 %v822, %v993
        %v1024 = vadd.f32 %v824, %v995
        %v1025 = vadd.f32 %v827, %v998
        %v1026 = vadd.f32 %v829, %v1000
        %v1027 = vadd.f32 %v832, %v1003
        %v1028 = vadd.f32 %v834, %v1005
        %v1029 = vadd.f32 %v837, %v1008
        %v1030 = vadd.f32 %v839, %v1010
        %v1031 = vadd.f32 %v842, %v1013
        %v1032 = vadd.f32 %v844, %v1015
        %v1037 = vrot.slane %v534, 7
        %v1038 = vrot.slane %v535, 7
        %v1039 = vsel %vm602, %v1037, %v1038
        %v1040 = vrot.slane %v564, 7
        %v1041 = vrot.slane %v565, 7
        %v1042 = vsel %vm602, %v1040, %v1041
        %v1045 = vpack.c.bf16 %v611, %v608
        %v1046 = vpack.c.bf16 %v617, %v614
        %v1047 = vpack.c.bf16 %v623, %v620
        %v1048 = vpack.c.bf16 %v1039, %v626
        %v1049 = vpack.c.bf16 %v635, %v632
        %v1050 = vpack.c.bf16 %v641, %v638
        %v1051 = vpack.c.bf16 %v647, %v644
        %v1052 = vpack.c.bf16 %v1042, %v650
        %s1053 = scalar_lea.vmem %s3, 24
        %v1054 = vld [vmem:[%s1053] sm:$0xf]
        %v1055 = vld [vmem:[%s1053 + $0x4] sm:$0xf]
        %v1058 = vunpack.c.l.b16 %v1054
        %v1059 = vunpack.c.l.b16 %v1055
        %v1060 = vpack.c.b16 %v1059, %v1058
        %v1063 = vsel %vm431, %v1045, 0
        %v1066 = vsel %vm431, %v1046, 0
        %v1069 = vsel %vm431, %v1047, 0
        %v1072 = vsel %vm431, %v1048, 0
        %v1075 = vsel %vm431, %v1049, 0
        %v1078 = vsel %vm431, %v1050, 0
        %v1081 = vsel %vm431, %v1051, 0
        %v1084 = vsel %vm431, %v1052, 0
        %1086 = vmatpush.bf16.msra.mxu0 0
        %1087 = vmatpush.bf16.msra.mxu0 0
        %1088 = vmatpush.bf16.msra.mxu0 0
        %1089 = vmatpush.bf16.msra.mxu0 0
        %1090 = vmatpush.bf16.msra.mxu0 0
        %1091 = vmatpush.bf16.msra.mxu0 0
        %1092 = vmatpush.bf16.msra.mxu0 0
        %1093 = vmatpush.bf16.msra.mxu0 %v1060
        %1094 = vmatmul.bf16.gmra.mxu0 %v1063
        %v1095 = vpop.f32.mrf.mxu0
        %v1096 = vadd.f32 0.0, %v1095
        %v1097 = vpop.f32.mrf.mxu0
        %v1098 = vadd.f32 0.0, %v1097
        %1099 = vmatmul.bf16.gmra.mxu0 %v1066
        %v1100 = vpop.f32.mrf.mxu0
        %v1101 = vadd.f32 0.0, %v1100
        %v1102 = vpop.f32.mrf.mxu0
        %v1103 = vadd.f32 0.0, %v1102
        %1104 = vmatmul.bf16.gmra.mxu0 %v1069
        %v1105 = vpop.f32.mrf.mxu0
        %v1106 = vadd.f32 0.0, %v1105
        %v1107 = vpop.f32.mrf.mxu0
        %v1108 = vadd.f32 0.0, %v1107
        %1109 = vmatmul.bf16.gmra.mxu0 %v1072
        %v1110 = vpop.f32.mrf.mxu0
        %v1111 = vadd.f32 0.0, %v1110
        %v1112 = vpop.f32.mrf.mxu0
        %v1113 = vadd.f32 0.0, %v1112
        %1114 = vmatmul.bf16.gmra.mxu0 %v1075
        %v1115 = vpop.f32.mrf.mxu0
        %v1116 = vadd.f32 0.0, %v1115
        %v1117 = vpop.f32.mrf.mxu0
        %v1118 = vadd.f32 0.0, %v1117
        %1119 = vmatmul.bf16.gmra.mxu0 %v1078
        %v1120 = vpop.f32.mrf.mxu0
        %v1121 = vadd.f32 0.0, %v1120
        %v1122 = vpop.f32.mrf.mxu0
        %v1123 = vadd.f32 0.0, %v1122
        %1124 = vmatmul.bf16.gmra.mxu0 %v1081
        %v1125 = vpop.f32.mrf.mxu0
        %v1126 = vadd.f32 0.0, %v1125
        %v1127 = vpop.f32.mrf.mxu0
        %v1128 = vadd.f32 0.0, %v1127
        %1129 = vmatmul.bf16.gmra.mxu0 %v1084
        %v1130 = vpop.f32.mrf.mxu0
        %v1131 = vadd.f32 0.0, %v1130
        %v1132 = vpop.f32.mrf.mxu0
        %v1133 = vadd.f32 0.0, %v1132
        %1134 = vdwg.mxu0
        %v1135 = vadd.f32 %v1017, %v1096
        %v1136 = vadd.f32 %v1018, %v1098
        %v1137 = vadd.f32 %v1019, %v1101
        %v1138 = vadd.f32 %v1020, %v1103
        %v1139 = vadd.f32 %v1021, %v1106
        %v1140 = vadd.f32 %v1022, %v1108
        %v1141 = vadd.f32 %v1023, %v1111
        %v1142 = vadd.f32 %v1024, %v1113
        %v1143 = vadd.f32 %v1025, %v1116
        %v1144 = vadd.f32 %v1026, %v1118
        %v1145 = vadd.f32 %v1027, %v1121
        %v1146 = vadd.f32 %v1028, %v1123
        %v1147 = vadd.f32 %v1029, %v1126
        %v1148 = vadd.f32 %v1030, %v1128
        %v1149 = vadd.f32 %v1031, %v1131
        %v1150 = vadd.f32 %v1032, %v1133
        %v1151 = vpack.c.bf16 %v517, %v514
        %v1152 = vpack.c.bf16 %v523, %v520
        %v1153 = vpack.c.bf16 %v529, %v526
        %v1154 = vpack.c.bf16 %v535, %v532
        %v1155 = vpack.c.bf16 %v547, %v544
        %v1156 = vpack.c.bf16 %v553, %v550
        %v1157 = vpack.c.bf16 %v559, %v556
        %v1158 = vpack.c.bf16 %v565, %v562
        %s1159 = scalar_lea.vmem %s3, 32
        %v1160 = vld [vmem:[%s1159] sm:$0xf]
        %v1161 = vld [vmem:[%s1159 + $0x4] sm:$0xf]
        %v1164 = vunpack.c.l.b16 %v1160
        %v1165 = vunpack.c.l.b16 %v1161
        %v1166 = vpack.c.b16 %v1165, %v1164
        %v1169 = vsel %vm431, %v1151, 0
        %v1172 = vsel %vm431, %v1152, 0
        %v1175 = vsel %vm431, %v1153, 0
        %v1178 = vsel %vm431, %v1154, 0
        %v1181 = vsel %vm431, %v1155, 0
        %v1184 = vsel %vm431, %v1156, 0
        %v1187 = vsel %vm431, %v1157, 0
        %v1190 = vsel %vm431, %v1158, 0
        %1192 = vmatpush.bf16.msra.mxu0 0
        %1193 = vmatpush.bf16.msra.mxu0 0
        %1194 = vmatpush.bf16.msra.mxu0 0
        %1195 = vmatpush.bf16.msra.mxu0 0
        %1196 = vmatpush.bf16.msra.mxu0 0
        %1197 = vmatpush.bf16.msra.mxu0 0
        %1198 = vmatpush.bf16.msra.mxu0 0
        %1199 = vmatpush.bf16.msra.mxu0 %v1166
        %1200 = vmatmul.bf16.gmra.mxu0 %v1169
        %v1201 = vpop.f32.mrf.mxu0
        %v1202 = vadd.f32 0.0, %v1201
        %v1203 = vpop.f32.mrf.mxu0
        %v1204 = vadd.f32 0.0, %v1203
        %1205 = vmatmul.bf16.gmra.mxu0 %v1172
        %v1206 = vpop.f32.mrf.mxu0
        %v1207 = vadd.f32 0.0, %v1206
        %v1208 = vpop.f32.mrf.mxu0
        %v1209 = vadd.f32 0.0, %v1208
        %1210 = vmatmul.bf16.gmra.mxu0 %v1175
        %v1211 = vpop.f32.mrf.mxu0
        %v1212 = vadd.f32 0.0, %v1211
        %v1213 = vpop.f32.mrf.mxu0
        %v1214 = vadd.f32 0.0, %v1213
        %1215 = vmatmul.bf16.gmra.mxu0 %v1178
        %v1216 = vpop.f32.mrf.mxu0
        %v1217 = vadd.f32 0.0, %v1216
        %v1218 = vpop.f32.mrf.mxu0
        %v1219 = vadd.f32 0.0, %v1218
        %1220 = vmatmul.bf16.gmra.mxu0 %v1181
        %v1221 = vpop.f32.mrf.mxu0
        %v1222 = vadd.f32 0.0, %v1221
        %v1223 = vpop.f32.mrf.mxu0
        %v1224 = vadd.f32 0.0, %v1223
        %1225 = vmatmul.bf16.gmra.mxu0 %v1184
        %v1226 = vpop.f32.mrf.mxu0
        %v1227 = vadd.f32 0.0, %v1226
        %v1228 = vpop.f32.mrf.mxu0
        %v1229 = vadd.f32 0.0, %v1228
        %1230 = vmatmul.bf16.gmra.mxu0 %v1187
        %v1231 = vpop.f32.mrf.mxu0
        %v1232 = vadd.f32 0.0, %v1231
        %v1233 = vpop.f32.mrf.mxu0
        %v1234 = vadd.f32 0.0, %v1233
        %1235 = vmatmul.bf16.gmra.mxu0 %v1190
        %v1236 = vpop.f32.mrf.mxu0
        %v1237 = vadd.f32 0.0, %v1236
        %v1238 = vpop.f32.mrf.mxu0
        %v1239 = vadd.f32 0.0, %v1238
        %1240 = vdwg.mxu0
        %v1241 = vadd.f32 %v1135, %v1202
        %v1242 = vadd.f32 %v1136, %v1204
        %v1243 = vadd.f32 %v1137, %v1207
        %v1244 = vadd.f32 %v1138, %v1209
        %v1245 = vadd.f32 %v1139, %v1212
        %v1246 = vadd.f32 %v1140, %v1214
        %v1247 = vadd.f32 %v1141, %v1217
        %v1248 = vadd.f32 %v1142, %v1219
        %v1249 = vadd.f32 %v1143, %v1222
        %v1250 = vadd.f32 %v1144, %v1224
        %v1251 = vadd.f32 %v1145, %v1227
        %v1252 = vadd.f32 %v1146, %v1229
        %v1253 = vadd.f32 %v1147, %v1232
        %v1254 = vadd.f32 %v1148, %v1234
        %v1255 = vadd.f32 %v1149, %v1237
        %v1256 = vadd.f32 %v1150, %v1239
        %v1259 = vrot.slane %v535, 1
        %v1260 = vrot.slane %v536, 1
        %v1261 = vsel %vm862, %v1259, %v1260
        %v1262 = vrot.slane %v565, 1
        %v1263 = vrot.slane %v566, 1
        %v1264 = vsel %vm862, %v1262, %v1263
        %v1267 = vpack.c.bf16 %v871, %v868
        %v1268 = vpack.c.bf16 %v877, %v874
        %v1269 = vpack.c.bf16 %v883, %v880
        %v1270 = vpack.c.bf16 %v1261, %v886
        %v1271 = vpack.c.bf16 %v895, %v892
        %v1272 = vpack.c.bf16 %v901, %v898
        %v1273 = vpack.c.bf16 %v907, %v904
        %v1274 = vpack.c.bf16 %v1264, %v910
        %s1275 = scalar_lea.vmem %s3, 40
        %v1276 = vld [vmem:[%s1275] sm:$0xf]
        %v1277 = vld [vmem:[%s1275 + $0x4] sm:$0xf]
        %v1280 = vunpack.c.l.b16 %v1276
        %v1281 = vunpack.c.l.b16 %v1277
        %v1282 = vpack.c.b16 %v1281, %v1280
        %v1285 = vsel %vm431, %v1267, 0
        %v1288 = vsel %vm431, %v1268, 0
        %v1291 = vsel %vm431, %v1269, 0
        %v1294 = vsel %vm431, %v1270, 0
        %v1297 = vsel %vm431, %v1271, 0
        %v1300 = vsel %vm431, %v1272, 0
        %v1303 = vsel %vm431, %v1273, 0
        %v1306 = vsel %vm431, %v1274, 0
        %1308 = vmatpush.bf16.msra.mxu0 0
        %1309 = vmatpush.bf16.msra.mxu0 0
        %1310 = vmatpush.bf16.msra.mxu0 0
        %1311 = vmatpush.bf16.msra.mxu0 0
        %1312 = vmatpush.bf16.msra.mxu0 0
        %1313 = vmatpush.bf16.msra.mxu0 0
        %1314 = vmatpush.bf16.msra.mxu0 0
        %1315 = vmatpush.bf16.msra.mxu0 %v1282
        %1316 = vmatmul.bf16.gmra.mxu0 %v1285
        %v1317 = vpop.f32.mrf.mxu0
        %v1318 = vadd.f32 0.0, %v1317
        %v1319 = vpop.f32.mrf.mxu0
        %v1320 = vadd.f32 0.0, %v1319
        %1321 = vmatmul.bf16.gmra.mxu0 %v1288
        %v1322 = vpop.f32.mrf.mxu0
        %v1323 = vadd.f32 0.0, %v1322
        %v1324 = vpop.f32.mrf.mxu0
        %v1325 = vadd.f32 0.0, %v1324
        %1326 = vmatmul.bf16.gmra.mxu0 %v1291
        %v1327 = vpop.f32.mrf.mxu0
        %v1328 = vadd.f32 0.0, %v1327
        %v1329 = vpop.f32.mrf.mxu0
        %v1330 = vadd.f32 0.0, %v1329
        %1331 = vmatmul.bf16.gmra.mxu0 %v1294
        %v1332 = vpop.f32.mrf.mxu0
        %v1333 = vadd.f32 0.0, %v1332
        %v1334 = vpop.f32.mrf.mxu0
        %v1335 = vadd.f32 0.0, %v1334
        %1336 = vmatmul.bf16.gmra.mxu0 %v1297
        %v1337 = vpop.f32.mrf.mxu0
        %v1338 = vadd.f32 0.0, %v1337
        %v1339 = vpop.f32.mrf.mxu0
        %v1340 = vadd.f32 0.0, %v1339
        %1341 = vmatmul.bf16.gmra.mxu0 %v1300
        %v1342 = vpop.f32.mrf.mxu0
        %v1343 = vadd.f32 0.0, %v1342
        %v1344 = vpop.f32.mrf.mxu0
        %v1345 = vadd.f32 0.0, %v1344
        %1346 = vmatmul.bf16.gmra.mxu0 %v1303
        %v1347 = vpop.f32.mrf.mxu0
        %v1348 = vadd.f32 0.0, %v1347
        %v1349 = vpop.f32.mrf.mxu0
        %v1350 = vadd.f32 0.0, %v1349
        %1351 = vmatmul.bf16.gmra.mxu0 %v1306
        %v1352 = vpop.f32.mrf.mxu0
        %v1353 = vadd.f32 0.0, %v1352
        %v1354 = vpop.f32.mrf.mxu0
        %v1355 = vadd.f32 0.0, %v1354
        %1356 = vdwg.mxu0
        %v1357 = vadd.f32 %v1241, %v1318
        %v1358 = vadd.f32 %v1242, %v1320
        %v1359 = vadd.f32 %v1243, %v1323
        %v1360 = vadd.f32 %v1244, %v1325
        %v1361 = vadd.f32 %v1245, %v1328
        %v1362 = vadd.f32 %v1246, %v1330
        %v1363 = vadd.f32 %v1247, %v1333
        %v1364 = vadd.f32 %v1248, %v1335
        %v1365 = vadd.f32 %v1249, %v1338
        %v1366 = vadd.f32 %v1250, %v1340
        %v1367 = vadd.f32 %v1251, %v1343
        %v1368 = vadd.f32 %v1252, %v1345
        %v1369 = vadd.f32 %v1253, %v1348
        %v1370 = vadd.f32 %v1254, %v1350
        %v1371 = vadd.f32 %v1255, %v1353
        %v1372 = vadd.f32 %v1256, %v1355
        %v1377 = vrot.slane %v537, 7
        %v1378 = vrot.slane %v538, 7
        %v1379 = vsel %vm602, %v1377, %v1378
        %v1380 = vrot.slane %v567, 7
        %v1381 = vrot.slane %v568, 7
        %v1382 = vsel %vm602, %v1380, %v1381
        %v1385 = vpack.c.bf16 %v1379, %v1039
        %v1386 = vpack.c.bf16 %v1382, %v1042
        %s1387 = scalar_lea.vmem %s3, 48
        %v1388 = vld [vmem:[%s1387] sm:$0xf]
        %v1389 = vld [vmem:[%s1387 + $0x4] sm:$0xf]
        %v1392 = vunpack.c.l.b16 %v1388
        %v1393 = vunpack.c.l.b16 %v1389
        %v1394 = vpack.c.b16 %v1393, %v1392
        %v1397 = vsel %vm431, %v1385, 0
        %v1400 = vsel %vm431, %v1386, 0
        %1402 = vmatpush.bf16.msra.mxu0 0
        %1403 = vmatpush.bf16.msra.mxu0 0
        %1404 = vmatpush.bf16.msra.mxu0 0
        %1405 = vmatpush.bf16.msra.mxu0 0
        %1406 = vmatpush.bf16.msra.mxu0 0
        %1407 = vmatpush.bf16.msra.mxu0 0
        %1408 = vmatpush.bf16.msra.mxu0 0
        %1409 = vmatpush.bf16.msra.mxu0 %v1394
        %1410 = vmatmul.bf16.gmra.mxu0 %v777
        %v1411 = vpop.f32.mrf.mxu0
        %v1412 = vadd.f32 0.0, %v1411
        %v1413 = vpop.f32.mrf.mxu0
        %v1414 = vadd.f32 0.0, %v1413
        %1415 = vmatmul.bf16.gmra.mxu0 %v780
        %v1416 = vpop.f32.mrf.mxu0
        %v1417 = vadd.f32 0.0, %v1416
        %v1418 = vpop.f32.mrf.mxu0
        %v1419 = vadd.f32 0.0, %v1418
        %1420 = vmatmul.bf16.gmra.mxu0 %v783
        %v1421 = vpop.f32.mrf.mxu0
        %v1422 = vadd.f32 0.0, %v1421
        %v1423 = vpop.f32.mrf.mxu0
        %v1424 = vadd.f32 0.0, %v1423
        %1425 = vmatmul.bf16.gmra.mxu0 %v1397
        %v1426 = vpop.f32.mrf.mxu0
        %v1427 = vadd.f32 0.0, %v1426
        %v1428 = vpop.f32.mrf.mxu0
        %v1429 = vadd.f32 0.0, %v1428
        %1430 = vmatmul.bf16.gmra.mxu0 %v789
        %v1431 = vpop.f32.mrf.mxu0
        %v1432 = vadd.f32 0.0, %v1431
        %v1433 = vpop.f32.mrf.mxu0
        %v1434 = vadd.f32 0.0, %v1433
        %1435 = vmatmul.bf16.gmra.mxu0 %v792
        %v1436 = vpop.f32.mrf.mxu0
        %v1437 = vadd.f32 0.0, %v1436
        %v1438 = vpop.f32.mrf.mxu0
        %v1439 = vadd.f32 0.0, %v1438
        %1440 = vmatmul.bf16.gmra.mxu0 %v795
        %v1441 = vpop.f32.mrf.mxu0
        %v1442 = vadd.f32 0.0, %v1441
        %v1443 = vpop.f32.mrf.mxu0
        %v1444 = vadd.f32 0.0, %v1443
        %1445 = vmatmul.bf16.gmra.mxu0 %v1400
        %v1446 = vpop.f32.mrf.mxu0
        %v1447 = vadd.f32 0.0, %v1446
        %v1448 = vpop.f32.mrf.mxu0
        %v1449 = vadd.f32 0.0, %v1448
        %1450 = vdwg.mxu0
        %v1451 = vadd.f32 %v1357, %v1412
        %v1452 = vadd.f32 %v1358, %v1414
        %v1453 = vadd.f32 %v1359, %v1417
        %v1454 = vadd.f32 %v1360, %v1419
        %v1455 = vadd.f32 %v1361, %v1422
        %v1456 = vadd.f32 %v1362, %v1424
        %v1457 = vadd.f32 %v1363, %v1427
        %v1458 = vadd.f32 %v1364, %v1429
        %v1459 = vadd.f32 %v1365, %v1432
        %v1460 = vadd.f32 %v1366, %v1434
        %v1461 = vadd.f32 %v1367, %v1437
        %v1462 = vadd.f32 %v1368, %v1439
        %v1463 = vadd.f32 %v1369, %v1442
        %v1464 = vadd.f32 %v1370, %v1444
        %v1465 = vadd.f32 %v1371, %v1447
        %v1466 = vadd.f32 %v1372, %v1449
        %v1467 = vpack.c.bf16 %v538, %v535
        %v1468 = vpack.c.bf16 %v568, %v565
        %s1469 = scalar_lea.vmem %s3, 56
        %v1470 = vld [vmem:[%s1469] sm:$0xf]
        %v1471 = vld [vmem:[%s1469 + $0x4] sm:$0xf]
        %v1474 = vunpack.c.l.b16 %v1470
        %v1475 = vunpack.c.l.b16 %v1471
        %v1476 = vpack.c.b16 %v1475, %v1474
        %v1479 = vsel %vm431, %v1467, 0
        %v1482 = vsel %vm431, %v1468, 0
        %1484 = vmatpush.bf16.msra.mxu0 0
        %1485 = vmatpush.bf16.msra.mxu0 0
        %1486 = vmatpush.bf16.msra.mxu0 0
        %1487 = vmatpush.bf16.msra.mxu0 0
        %1488 = vmatpush.bf16.msra.mxu0 0
        %1489 = vmatpush.bf16.msra.mxu0 0
        %1490 = vmatpush.bf16.msra.mxu0 0
        %1491 = vmatpush.bf16.msra.mxu0 %v1476
        %1492 = vmatmul.bf16.gmra.mxu0 %v698
        %v1493 = vpop.f32.mrf.mxu0
        %v1494 = vadd.f32 0.0, %v1493
        %v1495 = vpop.f32.mrf.mxu0
        %v1496 = vadd.f32 0.0, %v1495
        %1497 = vmatmul.bf16.gmra.mxu0 %v701
        %v1498 = vpop.f32.mrf.mxu0
        %v1499 = vadd.f32 0.0, %v1498
        %v1500 = vpop.f32.mrf.mxu0
        %v1501 = vadd.f32 0.0, %v1500
        %1502 = vmatmul.bf16.gmra.mxu0 %v704
        %v1503 = vpop.f32.mrf.mxu0
        %v1504 = vadd.f32 0.0, %v1503
        %v1505 = vpop.f32.mrf.mxu0
        %v1506 = vadd.f32 0.0, %v1505
        %1507 = vmatmul.bf16.gmra.mxu0 %v1479
        %v1508 = vpop.f32.mrf.mxu0
        %v1509 = vadd.f32 0.0, %v1508
        %v1510 = vpop.f32.mrf.mxu0
        %v1511 = vadd.f32 0.0, %v1510
        %1512 = vmatmul.bf16.gmra.mxu0 %v710
        %v1513 = vpop.f32.mrf.mxu0
        %v1514 = vadd.f32 0.0, %v1513
        %v1515 = vpop.f32.mrf.mxu0
        %v1516 = vadd.f32 0.0, %v1515
        %1517 = vmatmul.bf16.gmra.mxu0 %v713
        %v1518 = vpop.f32.mrf.mxu0
        %v1519 = vadd.f32 0.0, %v1518
        %v1520 = vpop.f32.mrf.mxu0
        %v1521 = vadd.f32 0.0, %v1520
        %1522 = vmatmul.bf16.gmra.mxu0 %v716
        %v1523 = vpop.f32.mrf.mxu0
        %v1524 = vadd.f32 0.0, %v1523
        %v1525 = vpop.f32.mrf.mxu0
        %v1526 = vadd.f32 0.0, %v1525
        %1527 = vmatmul.bf16.gmra.mxu0 %v1482
        %v1528 = vpop.f32.mrf.mxu0
        %v1529 = vadd.f32 0.0, %v1528
        %v1530 = vpop.f32.mrf.mxu0
        %v1531 = vadd.f32 0.0, %v1530
        %1532 = vdwg.mxu0
        %v1533 = vadd.f32 %v1451, %v1494
        %v1534 = vadd.f32 %v1452, %v1496
        %v1535 = vadd.f32 %v1453, %v1499
        %v1536 = vadd.f32 %v1454, %v1501
        %v1537 = vadd.f32 %v1455, %v1504
        %v1538 = vadd.f32 %v1456, %v1506
        %v1539 = vadd.f32 %v1457, %v1509
        %v1540 = vadd.f32 %v1458, %v1511
        %v1541 = vadd.f32 %v1459, %v1514
        %v1542 = vadd.f32 %v1460, %v1516
        %v1543 = vadd.f32 %v1461, %v1519
        %v1544 = vadd.f32 %v1462, %v1521
        %v1545 = vadd.f32 %v1463, %v1524
        %v1546 = vadd.f32 %v1464, %v1526
        %v1547 = vadd.f32 %v1465, %v1529
        %v1548 = vadd.f32 %v1466, %v1531
        %v1551 = vrot.slane %v538, 1
        %v1552 = vrot.slane %v539, 1
        %v1553 = vsel %vm862, %v1551, %v1552
        %v1554 = vrot.slane %v568, 1
        %v1555 = vrot.slane %v569, 1
        %v1556 = vsel %vm862, %v1554, %v1555
        %v1559 = vpack.c.bf16 %v1553, %v1261
        %v1560 = vpack.c.bf16 %v1556, %v1264
        %s1561 = scalar_lea.vmem %s3, 64
        %v1562 = vld [vmem:[%s1561] sm:$0xf]
        %v1563 = vld [vmem:[%s1561 + $0x4] sm:$0xf]
        %v1566 = vunpack.c.l.b16 %v1562
        %v1567 = vunpack.c.l.b16 %v1563
        %v1568 = vpack.c.b16 %v1567, %v1566
        %v1571 = vsel %vm431, %v1559, 0
        %v1574 = vsel %vm431, %v1560, 0
        %1576 = vmatpush.bf16.msra.mxu0 0
        %1577 = vmatpush.bf16.msra.mxu0 0
        %1578 = vmatpush.bf16.msra.mxu0 0
        %1579 = vmatpush.bf16.msra.mxu0 0
        %1580 = vmatpush.bf16.msra.mxu0 0
        %1581 = vmatpush.bf16.msra.mxu0 0
        %1582 = vmatpush.bf16.msra.mxu0 0
        %1583 = vmatpush.bf16.msra.mxu0 %v1568
        %1584 = vmatmul.bf16.gmra.mxu0 %v948
        %v1585 = vpop.f32.mrf.mxu0
        %v1586 = vadd.f32 0.0, %v1585
        %v1587 = vpop.f32.mrf.mxu0
        %v1588 = vadd.f32 0.0, %v1587
        %1589 = vmatmul.bf16.gmra.mxu0 %v951
        %v1590 = vpop.f32.mrf.mxu0
        %v1591 = vadd.f32 0.0, %v1590
        %v1592 = vpop.f32.mrf.mxu0
        %v1593 = vadd.f32 0.0, %v1592
        %1594 = vmatmul.bf16.gmra.mxu0 %v954
        %v1595 = vpop.f32.mrf.mxu0
        %v1596 = vadd.f32 0.0, %v1595
        %v1597 = vpop.f32.mrf.mxu0
        %v1598 = vadd.f32 0.0, %v1597
        %1599 = vmatmul.bf16.gmra.mxu0 %v1571
        %v1600 = vpop.f32.mrf.mxu0
        %v1601 = vadd.f32 0.0, %v1600
        %v1602 = vpop.f32.mrf.mxu0
        %v1603 = vadd.f32 0.0, %v1602
        %1604 = vmatmul.bf16.gmra.mxu0 %v960
        %v1605 = vpop.f32.mrf.mxu0
        %v1606 = vadd.f32 0.0, %v1605
        %v1607 = vpop.f32.mrf.mxu0
        %v1608 = vadd.f32 0.0, %v1607
        %1609 = vmatmul.bf16.gmra.mxu0 %v963
        %v1610 = vpop.f32.mrf.mxu0
        %v1611 = vadd.f32 0.0, %v1610
        %v1612 = vpop.f32.mrf.mxu0
        %v1613 = vadd.f32 0.0, %v1612
        %1614 = vmatmul.bf16.gmra.mxu0 %v966
        %v1615 = vpop.f32.mrf.mxu0
        %v1616 = vadd.f32 0.0, %v1615
        %v1617 = vpop.f32.mrf.mxu0
        %v1618 = vadd.f32 0.0, %v1617
        %1619 = vmatmul.bf16.gmra.mxu0 %v1574
        %v1620 = vpop.f32.mrf.mxu0
        %v1621 = vadd.f32 0.0, %v1620
        %v1622 = vpop.f32.mrf.mxu0
        %v1623 = vadd.f32 0.0, %v1622
        %1624 = vdwg.mxu0
        %v1625 = vadd.f32 %v1533, %v1586
        %v1626 = vadd.f32 %v1534, %v1588
        %v1627 = vadd.f32 %v1535, %v1591
        %v1628 = vadd.f32 %v1536, %v1593
        %v1629 = vadd.f32 %v1537, %v1596
        %v1630 = vadd.f32 %v1538, %v1598
        %v1631 = vadd.f32 %v1539, %v1601
        %v1632 = vadd.f32 %v1540, %v1603
        %v1633 = vadd.f32 %v1541, %v1606
        %v1634 = vadd.f32 %v1542, %v1608
        %v1635 = vadd.f32 %v1543, %v1611
        %v1636 = vadd.f32 %v1544, %v1613
        %v1637 = vadd.f32 %v1545, %v1616
        %v1638 = vadd.f32 %v1546, %v1618
        %v1639 = vadd.f32 %v1547, %v1621
        %v1640 = vadd.f32 %v1548, %v1623
        %v1641 = vld [vmem:[%s4] sm:$0x1]
        %v1643 = vperm.slane %v1641, 0
        %v1645 = vadd.f32 %v1625, %v1643
        %v1646 = vadd.f32 %v1626, %v1643
        %v1647 = vadd.f32 %v1627, %v1643
        %v1648 = vadd.f32 %v1628, %v1643
        %v1649 = vadd.f32 %v1629, %v1643
        %v1650 = vadd.f32 %v1630, %v1643
        %v1651 = vadd.f32 %v1631, %v1643
        %v1652 = vadd.f32 %v1632, %v1643
        %v1653 = vadd.f32 %v1633, %v1643
        %v1654 = vadd.f32 %v1634, %v1643
        %v1655 = vadd.f32 %v1635, %v1643
        %v1656 = vadd.f32 %v1636, %v1643
        %v1657 = vadd.f32 %v1637, %v1643
        %v1658 = vadd.f32 %v1638, %v1643
        %v1659 = vadd.f32 %v1639, %v1643
        %v1660 = vadd.f32 %v1640, %v1643
        %v1661 = vmax.f32 %v1645, 0.0
        %v1662 = vmax.f32 %v1646, 0.0
        %v1663 = vmax.f32 %v1647, 0.0
        %v1664 = vmax.f32 %v1648, 0.0
        %v1665 = vmax.f32 %v1649, 0.0
        %v1666 = vmax.f32 %v1650, 0.0
        %v1667 = vmax.f32 %v1651, 0.0
        %v1668 = vmax.f32 %v1652, 0.0
        %v1669 = vmax.f32 %v1653, 0.0
        %v1670 = vmax.f32 %v1654, 0.0
        %v1671 = vmax.f32 %v1655, 0.0
        %v1672 = vmax.f32 %v1656, 0.0
        %v1673 = vmax.f32 %v1657, 0.0
        %v1674 = vmax.f32 %v1658, 0.0
        %v1675 = vmax.f32 %v1659, 0.0
        %v1676 = vmax.f32 %v1660, 0.0
        %v1677 = vpack.c.bf16 %v1662, %v1661
        %v1678 = vpack.c.bf16 %v1664, %v1663
        %v1679 = vpack.c.bf16 %v1666, %v1665
        %v1680 = vpack.c.bf16 %v1668, %v1667
        %v1681 = vpack.c.bf16 %v1670, %v1669
        %v1682 = vpack.c.bf16 %v1672, %v1671
        %v1683 = vpack.c.bf16 %v1674, %v1673
        %v1684 = vpack.c.bf16 %v1676, %v1675
        %v1685 = vld [vmem:[%s5] sm:$0xf]
        %v1686 = vld [vmem:[%s5 + $0x4] sm:$0xf]
        %v1687 = vld [vmem:[%s6] sm:$0x1]
        %v1689 = vperm.slane %v1687, 0
        %v1693 = vunpack.c.l.b16 %v1685
        %v1694 = vunpack.c.l.b16 %v1686
        %v1695 = vpack.c.b16 %v1694, %v1693
        %v1698 = vsel %vm431, %v1677, 0
        %v1701 = vsel %vm431, %v1678, 0
        %v1704 = vsel %vm431, %v1679, 0
        %v1707 = vsel %vm431, %v1680, 0
        %v1710 = vsel %vm431, %v1681, 0
        %v1713 = vsel %vm431, %v1682, 0
        %v1716 = vsel %vm431, %v1683, 0
        %v1719 = vsel %vm431, %v1684, 0
        %1721 = vmatpush.bf16.msra.mxu0 0
        %1722 = vmatpush.bf16.msra.mxu0 0
        %1723 = vmatpush.bf16.msra.mxu0 0
        %1724 = vmatpush.bf16.msra.mxu0 0
        %1725 = vmatpush.bf16.msra.mxu0 0
        %1726 = vmatpush.bf16.msra.mxu0 0
        %1727 = vmatpush.bf16.msra.mxu0 0
        %1728 = vmatpush.bf16.msra.mxu0 %v1695
        %1729 = vmatmul.bf16.gmra.mxu0 %v1698
        %v1730 = vpop.f32.mrf.mxu0
        %v1731 = vadd.f32 %v1689, %v1730
        %v1732 = vpop.f32.mrf.mxu0
        %v1733 = vadd.f32 %v1689, %v1732
        %1734 = vmatmul.bf16.gmra.mxu0 %v1701
        %v1735 = vpop.f32.mrf.mxu0
        %v1736 = vadd.f32 %v1689, %v1735
        %v1737 = vpop.f32.mrf.mxu0
        %v1738 = vadd.f32 %v1689, %v1737
        %1739 = vmatmul.bf16.gmra.mxu0 %v1704
        %v1740 = vpop.f32.mrf.mxu0
        %v1741 = vadd.f32 %v1689, %v1740
        %v1742 = vpop.f32.mrf.mxu0
        %v1743 = vadd.f32 %v1689, %v1742
        %1744 = vmatmul.bf16.gmra.mxu0 %v1707
        %v1745 = vpop.f32.mrf.mxu0
        %v1746 = vadd.f32 %v1689, %v1745
        %v1747 = vpop.f32.mrf.mxu0
        %v1748 = vadd.f32 %v1689, %v1747
        %1749 = vmatmul.bf16.gmra.mxu0 %v1710
        %v1750 = vpop.f32.mrf.mxu0
        %v1751 = vadd.f32 %v1689, %v1750
        %v1752 = vpop.f32.mrf.mxu0
        %v1753 = vadd.f32 %v1689, %v1752
        %1754 = vmatmul.bf16.gmra.mxu0 %v1713
        %v1755 = vpop.f32.mrf.mxu0
        %v1756 = vadd.f32 %v1689, %v1755
        %v1757 = vpop.f32.mrf.mxu0
        %v1758 = vadd.f32 %v1689, %v1757
        %1759 = vmatmul.bf16.gmra.mxu0 %v1716
        %v1760 = vpop.f32.mrf.mxu0
        %v1761 = vadd.f32 %v1689, %v1760
        %v1762 = vpop.f32.mrf.mxu0
        %v1763 = vadd.f32 %v1689, %v1762
        %1764 = vmatmul.bf16.gmra.mxu0 %v1719
        %v1765 = vpop.f32.mrf.mxu0
        %v1766 = vadd.f32 %v1689, %v1765
        %v1767 = vpop.f32.mrf.mxu0
        %v1768 = vadd.f32 %v1689, %v1767
        %1769 = vdwg.mxu0
        %v1770 = vadd.f32 %v1731, %v281
        %v1771 = vadd.f32 %v1733, %v282
        %v1772 = vadd.f32 %v1736, %v283
        %v1773 = vadd.f32 %v1738, %v284
        %v1774 = vadd.f32 %v1741, %v285
        %v1775 = vadd.f32 %v1743, %v286
        %v1776 = vadd.f32 %v1746, %v287
        %v1777 = vadd.f32 %v1748, %v288
        %v1778 = vadd.f32 %v1751, %v289
        %v1779 = vadd.f32 %v1753, %v290
        %v1780 = vadd.f32 %v1756, %v291
        %v1781 = vadd.f32 %v1758, %v292
        %v1782 = vadd.f32 %v1761, %v293
        %v1783 = vadd.f32 %v1763, %v294
        %v1784 = vadd.f32 %v1766, %v295
        %v1785 = vadd.f32 %v1768, %v296
        %v1786 = vmax.f32 %v1770, 0.0
        %v1787 = vmax.f32 %v1771, 0.0
        %v1788 = vmax.f32 %v1772, 0.0
        %v1789 = vmax.f32 %v1773, 0.0
        %v1790 = vmax.f32 %v1774, 0.0
        %v1791 = vmax.f32 %v1775, 0.0
        %v1792 = vmax.f32 %v1776, 0.0
        %v1793 = vmax.f32 %v1777, 0.0
        %v1794 = vmax.f32 %v1778, 0.0
        %v1795 = vmax.f32 %v1779, 0.0
        %v1796 = vmax.f32 %v1780, 0.0
        %v1797 = vmax.f32 %v1781, 0.0
        %v1798 = vmax.f32 %v1782, 0.0
        %v1799 = vmax.f32 %v1783, 0.0
        %v1800 = vmax.f32 %v1784, 0.0
        %v1801 = vmax.f32 %v1785, 0.0
        %1802 = vst.msk [vmem:[%s272] sm:$0xff] %vm341, %v1786
        %1803 = vst.msk [vmem:[%s272 + $0x8] sm:$0xff] %vm341, %v1787
        %1804 = vst.msk [vmem:[%s272 + $0x10] sm:$0xff] %vm341, %v1788
        %1805 = vst.msk [vmem:[%s272 + $0x18] sm:$0xff] %vm341, %v1789
        %1806 = vst.msk [vmem:[%s272 + $0x20] sm:$0xff] %vm341, %v1790
        %1807 = vst.msk [vmem:[%s272 + $0x28] sm:$0xff] %vm341, %v1791
        %1808 = vst.msk [vmem:[%s272 + $0x30] sm:$0xff] %vm341, %v1792
        %1809 = vst.msk [vmem:[%s272 + $0x38] sm:$0xff] %vm341, %v1793
        %1810 = vst.msk [vmem:[%s272 + $0x40] sm:$0xff] %vm341, %v1794
        %1811 = vst.msk [vmem:[%s272 + $0x48] sm:$0xff] %vm341, %v1795
        %1812 = vst.msk [vmem:[%s272 + $0x50] sm:$0xff] %vm341, %v1796
        %1813 = vst.msk [vmem:[%s272 + $0x58] sm:$0xff] %vm341, %v1797
        %1814 = vst.msk [vmem:[%s272 + $0x60] sm:$0xff] %vm341, %v1798
        %1815 = vst.msk [vmem:[%s272 + $0x68] sm:$0xff] %vm341, %v1799
        %1816 = vst.msk [vmem:[%s272 + $0x70] sm:$0xff] %vm341, %v1800
        %1817 = vst.msk [vmem:[%s272 + $0x78] sm:$0xff] %vm341, %v1801
        %s1818 = sand.u32 %s181, 1
        %s1819 = scalar_lea.sflag [#allocation4], %s1818
        %s1820 = sand.u32 %s181, 1
        %s1821 = smul.addr %s1820, 128
        %s1822 = scalar_lea.vmem [#allocation3], %s1821
        // Predicated region
        $region49: #{bottleneck_forward.1} parent=47 // pred_check
          %p1823 = pneg %p191
        $region50: #{bottleneck_forward.1} parent=47 // pred_check_branch
          %1825 = sbr.rel (%p1823) target = $region52
        $region51: #{bottleneck_forward.1} parent=47 // pred_region
          %s1826 = smul.u32 16, %s21
          %1828 = vsyncadd %s1819, 0
          %s1829 = smul.addr %s1826, 8
          %s1830 = scalar_lea.hbm %s7, %s1829
          %s1831 = sshll.u32 %s1822, 4
          %s1832 = int_to_ptr.vmem [resolvable:$true] %s1831
          %s1833 = sshll.u32 %s1830, 4
          %s1834 = int_to_ptr.hbm [resolvable:$true] %s1833
          %1839 = dma.vmem_to_hbm [thread:$0]  %s1832, 2048, %s1834, %s1819, 128, 128, 8
        $region52: #{bottleneck_forward.1} parent=47 // pred_fallthru
          _
      $region48: #{bottleneck_forward.1} parent=5 // pred_fallthru
        _
      %p1840 = scmp.le.s32.totalorder 2, %s16
      // Predicated region
      $region53: #{bottleneck_forward.1} parent=5 // pred_check
        %p1841 = pneg %p1840
      $region54: #{bottleneck_forward.1} parent=5 // pred_check_branch
        %1843 = sbr.rel (%p1841) target = $region56
      $region55: #{bottleneck_forward.1} parent=5 // pred_region
        %s1844 = ssub.s32 %s16, 2
        // Predicated region
        $region57: #{bottleneck_forward.1} parent=55 // pred_check
          %p1845 = pneg %p197
        $region58: #{bottleneck_forward.1} parent=55 // pred_check_branch
          %1847 = sbr.rel (%p1845) target = $region60
        $region59: #{bottleneck_forward.1} parent=55 // pred_region
          %s1848 = sand.u32 %s182, 1
          %s1849 = scalar_lea.sflag [#allocation4], %s1848
          %s1850 = sand.u32 %s182, 1
          %s1851 = smul.addr %s1850, 128
          %s1852 = scalar_lea.vmem [#allocation3], %s1851
          %1854 = dma.done %s1849, 2048
        $region60: #{bottleneck_forward.1} parent=55 // pred_fallthru
          _
      $region56: #{bottleneck_forward.1} parent=5 // pred_fallthru
        _
    $region6: #{bottleneck_forward.1} parent=1 // loop_footer
      %s20 = sadd.s32 1, %s16
    $region7: #{bottleneck_forward.1} parent=1 // loop_footer_branch
      %15 = sbr.rel target = $region3
    $region8: #{bottleneck_forward.1} parent=1 // loop_exit
      _
    %1855 = vsyncpa [#allocation4], 1
    %s1856 = scalar_lea.sflag [#allocation4], 1
    %1857 = vsyncpa %s1856, 1

</llo_original>
